<compile_context>
chip_gen: v7x
topology: tpu7x:2x2x1
jax: 0.10.0
libtpu: 0.0.40
codegen_flags: <defaults>
</compile_context>

<pallas_src>
import functools

import jax
import jax.numpy as jnp
from jax.experimental import pallas as pl
from jax.experimental.pallas import tpu as pltpu


# ----------------------------------------------------------------------------------
# Parameter setup (plain JAX glue)
# ----------------------------------------------------------------------------------
def spectral_normalize(w, key, n_power_iterations=1, eps=1e-12):
    """torch.nn.utils.spectral_norm: divide the weight by its top singular value
    estimated with power iteration (weight viewed as (Cout, Cin*Kh*Kw))."""
    cout = w.shape[0]
    wm = w.reshape(cout, -1)
    u = jax.random.normal(key, (cout,), dtype=w.dtype)
    u = u / (jnp.linalg.norm(u) + eps)
    v = None
    for _ in range(n_power_iterations):
        v = wm.T @ u
        v = v / (jnp.linalg.norm(v) + eps)
        u = wm @ v
        u = u / (jnp.linalg.norm(u) + eps)
    sigma = u @ (wm @ v)
    return w / sigma


def _round_up(v, m):
    return (v + m - 1) // m * m


# ----------------------------------------------------------------------------------
# Pallas kernel: fused conv1 + InstanceNorm + ReLU + conv2 + residual add
# ----------------------------------------------------------------------------------
def _resblock_kernel(w1_ref, w2_ref, colv_ref, xpad_ref, o_ref,
                     hpad_ref, im2col_ref, *, C, H, W, WF, Lp, dil):
    # w1_ref, w2_ref : VMEM (C, 9*C)      im2col weight matrices (tap-major columns)
    # colv_ref       : VMEM (1, Lp) i32   column index (l % WF), sentinel W on tail lanes
    # xpad_ref       : VMEM (C, SpFp) f32 reflect-padded input, flat, row width WF
    # o_ref          : VMEM (C, Lp)  f32  output in flat (width-WF) output space
    # hpad_ref       : VMEM (C, hpad_len) scratch: reflect-pad-by-1 of the intermediate
    # im2col_ref     : VMEM (9*C, Lp)     scratch: stacked tap slabs (shared by both convs)
    cdtype = im2col_ref.dtype
    inv_n = 1.0 / float(H * W)
    colv = colv_ref[...]                                          # (1, Lp)

    # ---- conv1 (3x3, dilation=dil): stack 9 shifted slabs, ONE MXU matmul ---------
    for ky in range(3):
        for kx in range(3):
            t = ky * 3 + kx
            off = dil * (ky * WF + kx)
            im2col_ref[pl.ds(t * C, C), :] = (
                xpad_ref[:, pl.ds(off, Lp)].astype(cdtype))
    acc = jnp.dot(w1_ref[...], im2col_ref[...],
                  preferred_element_type=jnp.float32)             # (C, Lp) f32

    # ---- InstanceNorm2d (affine=False, biased var, eps=1e-5) + ReLU, f32 stats ----
    valid = colv < W                                              # (1, Lp) bool
    am = jnp.where(valid, acc, 0.0)
    mu = jnp.sum(am, axis=1, keepdims=True) * inv_n               # (C, 1)
    ex2 = jnp.sum(am * acc, axis=1, keepdims=True) * inv_n
    var = jnp.maximum(ex2 - mu * mu, 0.0)
    h = jnp.maximum((acc - mu) * jax.lax.rsqrt(var + 1e-5), 0.0)  # (C, Lp) f32

    # ---- reflect-pad-by-1 of the intermediate: rows 1..H in ONE wide store --------
    #   padded col 0    <- h[., 1]      (roll by -1 == roll by Lp-1)
    #   padded col 1..W <- h[., col-1]  (roll by +1)
    #   padded col W+1  <- h[., W-2]    (roll by +3)
    h_p1 = pltpu.roll(h, 1, axis=1)
    h_m1 = pltpu.roll(h, Lp - 1, axis=1)
    h_p3 = pltpu.roll(h, 3, axis=1)
    hrow = jnp.where(colv == 0, h_m1,
                     jnp.where(colv == W + 1, h_p3, h_p1))
    hpad_ref[:, pl.ds(WF, Lp)] = hrow.astype(cdtype)
    # top / bottom reflect rows (cols 0..W+1, corners included)
    hpad_ref[:, pl.ds(0, W + 2)] = hpad_ref[:, pl.ds(2 * WF, W + 2)]
    hpad_ref[:, pl.ds((H + 1) * WF, W + 2)] = hpad_ref[:, pl.ds((H - 1) * WF, W + 2)]
    # NOTE: remaining hpad lanes (junk cols / tail rows) are intentionally left
    # uninitialized; they only feed junk output lanes, which are cropped in the wrapper
    # and must not feed a subsequently fused op without re-masking.

    # ---- conv2 (3x3, dilation=1): stack slabs, ONE MXU matmul, residual in f32 ----
    for ky in range(3):
        for kx in range(3):
            t = ky * 3 + kx
            im2col_ref[pl.ds(t * C, C), :] = hpad_ref[:, pl.ds(ky * WF + kx, Lp)]
    res = xpad_ref[:, pl.ds(dil * WF + dil, Lp)].astype(jnp.float32)   # original x
    o_ref[...] = res + jnp.dot(w2_ref[...], im2col_ref[...],
                               preferred_element_type=jnp.float32)


def residual_block_pallas(x, w1, w2, *, dilation=1, compute_dtype=jnp.bfloat16):
    """x: (N, C, H, W) f32; w1, w2: (C, C, 3, 3) f32 (already spectral-normalized).
    compute_dtype: dtype of the MXU operands (stats / residual / output stay f32)."""
    N, C, H, W = x.shape
    d = int(dilation)
    assert d >= 1 and H > d and W > d and H >= 2 and W >= 3

    cmult = 16 if compute_dtype == jnp.bfloat16 else 8
    Cp = _round_up(max(C, cmult), cmult)       # channel pad: sublane / MXU alignment
    WF = W + 2 * d                             # flat row width (conv1 padded width)
    L = (H - 1) * WF + W                       # minimal flat output extent
    Lp = _round_up(H * WF, 128)                # lane-dense working extent (>= L + 2d)
    SpF = (H + 2 * d) * WF                     # flat reflect-padded input length
    SpFp = _round_up(2 * d * (WF + 1) + Lp, 128)       # covers the furthest slab read
    hpad_len = _round_up(2 * WF + 2 + Lp, 128)         # covers the furthest hpad read

    if Cp != C:
        x = jnp.pad(x, ((0, 0), (0, Cp - C), (0, 0), (0, 0)))
        w1 = jnp.pad(w1, ((0, Cp - C), (0, Cp - C), (0, 0), (0, 0)))
        w2 = jnp.pad(w2, ((0, Cp - C), (0, Cp - C), (0, 0), (0, 0)))

    # reflect padding + flattening (layout plumbing, plain JAX); kept f32 so the
    # residual read inside the kernel is exact even in the bf16 path.
    xpad = jnp.pad(x, ((0, 0), (0, 0), (d, d), (d, d)), mode="reflect")
    xpad_flat = xpad.reshape(N, Cp, SpF).astype(jnp.float32)
    xpad_flat = jnp.pad(xpad_flat, ((0, 0), (0, 0), (0, SpFp - SpF)))

    # im2col weight matrices: (Cout, 9*Cin), column order (ky, kx, cin) == tap-major.
    # Weights are cast to the compute dtype only AFTER spectral normalization.
    w1m = jnp.transpose(w1, (0, 2, 3, 1)).reshape(Cp, 9 * Cp).astype(compute_dtype)
    w2m = jnp.transpose(w2, (0, 2, 3, 1)).reshape(Cp, 9 * Cp).astype(compute_dtype)

    # single small int32 lane-metadata vector: column index per flat lane,
    # sentinel W (== "invalid, not an edge") beyond row H-1.
    lane = jnp.arange(Lp, dtype=jnp.int32)
    colv = jnp.where(lane < H * WF, lane % WF, W).astype(jnp.int32)[None, :]

    csize = jnp.dtype(compute_dtype).itemsize
    est = (2 * Cp * SpFp * 4               # xpad block, double buffered
           + 2 * Cp * Lp * 4               # out block, double buffered
           + 4 * Cp * 9 * Cp * csize       # w1m + w2m, double buffered
           + 2 * Lp * 4                    # colv
           + Cp * hpad_len * csize         # hpad scratch
           + 9 * Cp * Lp * csize           # im2col scratch
           + 6 * Cp * Lp * 4)              # live f32 temporaries (acc / h / rolls)
    vmem_limit = min(96 * 1024 * 1024, max(32 * 1024 * 1024, int(1.5 * est)))

    kernel = functools.partial(_resblock_kernel, C=Cp, H=H, W=W, WF=WF, Lp=Lp, dil=d)

    out_flat = pl.pallas_call(
        kernel,
        out_shape=jax.ShapeDtypeStruct((N, Cp, Lp), jnp.float32),
        grid_spec=pltpu.PrefetchScalarGridSpec(
            num_scalar_prefetch=0,
            grid=(N,),
            in_specs=[
                pl.BlockSpec((Cp, 9 * Cp), lambda n: (0, 0)),          # conv1 weights
                pl.BlockSpec((Cp, 9 * Cp), lambda n: (0, 0)),          # conv2 weights
                pl.BlockSpec((1, Lp), lambda n: (0, 0)),               # column index
                pl.BlockSpec((None, Cp, SpFp), lambda n: (n, 0, 0)),   # padded x (flat)
            ],
            out_specs=pl.BlockSpec((None, Cp, Lp), lambda n: (n, 0, 0)),
            scratch_shapes=[
                pltpu.VMEM((Cp, hpad_len), compute_dtype),             # padded interm.
                pltpu.VMEM((9 * Cp, Lp), compute_dtype),               # im2col slabs
            ],
        ),
        compiler_params=pltpu.CompilerParams(
            dimension_semantics=("parallel",),       # batch axis -> megacore split
            vmem_limit_bytes=vmem_limit),
    )(w1m, w2m, colv, xpad_flat)

    # crop junk lanes / padded channels back to (N, C, H, W)
    out = out_flat[:, :, :H * WF].reshape(N, Cp, H, WF)[:, :C, :, :W]
    return out


# ----------------------------------------------------------------------------------
# Pure-JAX reference (for correctness check)
# ----------------------------------------------------------------------------------
def residual_block_ref(x, w1, w2, *, dilation=1):
    d = dilation
    xp = jnp.pad(x, ((0, 0), (0, 0), (d, d), (d, d)), mode="reflect")
    y = jax.lax.conv_general_dilated(
        xp, w1, window_strides=(1, 1), padding="VALID", rhs_dilation=(d, d),
        dimension_numbers=("NCHW", "OIHW", "NCHW"),
        precision=jax.lax.Precision.HIGHEST)
    mu = y.mean(axis=(2, 3), keepdims=True)
    var = ((y - mu) ** 2).mean(axis=(2, 3), keepdims=True)
    y = (y - mu) / jnp.sqrt(var + 1e-5)
    y = jnp.maximum(y, 0.0)
    yp = jnp.pad(y, ((0, 0), (0, 0), (1, 1), (1, 1)), mode="reflect")
    z = jax.lax.conv_general_dilated(
        yp, w2, window_strides=(1, 1), padding="VALID",
        dimension_numbers=("NCHW", "OIHW", "NCHW"),
        precision=jax.lax.Precision.HIGHEST)
    return z + x


# ----------------------------------------------------------------------------------
if __name__ == "__main__":
    N, C, H, W = 2, 4, 16, 16

    key = jax.random.PRNGKey(0)
    kx_, kw1, kw2, ku1, ku2 = jax.random.split(key, 5)

    x = jax.random.normal(kx_, (N, C, H, W), dtype=jnp.float32)

    # Conv2d weights (OIHW), no bias (spectral_norm path sets bias=False)
    w1_raw = jax.random.normal(kw1, (C, C, 3, 3), dtype=jnp.float32) * 0.1
    w2_raw = jax.random.normal(kw2, (C, C, 3, 3), dtype=jnp.float32) * 0.1
    w1 = spectral_normalize(w1_raw, ku1)
    w2 = spectral_normalize(w2_raw, ku2)

    for dil in (1, 2):   # module default dilation=1; kernel supports general dilation
        ref = residual_block_ref(x, w1, w2, dilation=dil)

        # exact path (f32 MXU operands): tight tolerance vs. f32 reference
        out = residual_block_pallas(x, w1, w2, dilation=dil,
                                    compute_dtype=jnp.float32)
        out = jax.block_until_ready(out)
        assert out.shape == (N, C, H, W)
        err = float(jnp.max(jnp.abs(out - ref)))
        assert jnp.allclose(out, ref, atol=1e-3, rtol=1e-3), (
            f"f32 path, dilation={dil}: max abs err = {err}")

        # fast path (bf16 MXU operands, f32 stats/residual): looser tolerance
        outb = residual_block_pallas(x, w1, w2, dilation=dil,
                                     compute_dtype=jnp.bfloat16)
        outb = jax.block_until_ready(outb)
        errb = float(jnp.max(jnp.abs(outb - ref)))
        assert jnp.allclose(outb, ref, atol=5e-2, rtol=5e-2), (
            f"bf16 path, dilation={dil}: max abs err = {errb}")

    print("KERNEL_OK")
</pallas_src>

<mosaic_0001>
module attributes {stable_mosaic.version = 11 : i64} {
  func.func @_resblock_kernel(%arg0: i32, %arg1: memref<8x72xf32, #tpu.memory_space<vmem>>, %arg2: memref<8x72xf32, #tpu.memory_space<vmem>>, %arg3: memref<1x384xi32, #tpu.memory_space<vmem>>, %arg4: memref<1x8x512xf32, #tpu.memory_space<vmem>>, %arg5: memref<1x8x384xf32, #tpu.memory_space<vmem>>, %arg6: memref<8x512xf32, #tpu.memory_space<vmem>>, %arg7: memref<72x384xf32, #tpu.memory_space<vmem>>) attributes {dimension_semantics = [#tpu.dimension_semantics<parallel>], iteration_bounds = array<i64: 2>, scalar_prefetch = 0 : i64, scratch_operands = 2 : i64, tpu.core_type = #tpu.core_type<tc>, window_params = [{pipeline_mode = #tpu.pipeline_mode<synchronous>, transform_indices = @transform_0, window_bounds = array<i64: 8, 72>}, {pipeline_mode = #tpu.pipeline_mode<synchronous>, transform_indices = @transform_1, window_bounds = array<i64: 8, 72>}, {pipeline_mode = #tpu.pipeline_mode<synchronous>, transform_indices = @transform_2, window_bounds = array<i64: 1, 384>}, {transform_indices = @transform_3, window_bounds = array<i64: 1, 8, 512>}, {transform_indices = @transform_4, window_bounds = array<i64: 1, 8, 384>}]} {
    %c0 = arith.constant 0 : index
    %c0_0 = arith.constant 0 : index
    %0 = vector.load %arg3[%c0, %c0_0] : memref<1x384xi32, #tpu.memory_space<vmem>>, vector<1x384xi32>
    %c0_1 = arith.constant 0 : index
    %c0_2 = arith.constant 0 : index
    %c0_3 = arith.constant 0 : index
    %1 = vector.load %arg4[%c0_1, %c0_2, %c0_3] : memref<1x8x512xf32, #tpu.memory_space<vmem>>, vector<1x8x384xf32>
    %2 = vector.shape_cast %1 : vector<1x8x384xf32> to vector<8x384xf32>
    %c0_4 = arith.constant 0 : index
    %c0_5 = arith.constant 0 : index
    %3 = vector.load %arg7[%c0_4, %c0_5] : memref<72x384xf32, #tpu.memory_space<vmem>>, vector<8x384xf32>
    tpu.vector_store %arg7[%c0_4, %c0_5], %2 {strides = array<i32>} : memref<72x384xf32, #tpu.memory_space<vmem>>, vector<8x384xf32>,
    %c0_6 = arith.constant 0 : index
    %c0_7 = arith.constant 0 : index
    %c1 = arith.constant 1 : index
    %4 = vector.load %arg4[%c0_6, %c0_7, %c1] : memref<1x8x512xf32, #tpu.memory_space<vmem>>, vector<1x8x384xf32>
    %5 = vector.shape_cast %4 : vector<1x8x384xf32> to vector<8x384xf32>
    %c8 = arith.constant 8 : index
    %c0_8 = arith.constant 0 : index
    %6 = vector.load %arg7[%c8, %c0_8] : memref<72x384xf32, #tpu.memory_space<vmem>>, vector<8x384xf32>
    tpu.vector_store %arg7[%c8, %c0_8], %5 {strides = array<i32>} : memref<72x384xf32, #tpu.memory_space<vmem>>, vector<8x384xf32>,
    %c0_9 = arith.constant 0 : index
    %c0_10 = arith.constant 0 : index
    %c2 = arith.constant 2 : index
    %7 = vector.load %arg4[%c0_9, %c0_10, %c2] : memref<1x8x512xf32, #tpu.memory_space<vmem>>, vector<1x8x384xf32>
    %8 = vector.shape_cast %7 : vector<1x8x384xf32> to vector<8x384xf32>
    %c16 = arith.constant 16 : index
    %c0_11 = arith.constant 0 : index
    %9 = vector.load %arg7[%c16, %c0_11] : memref<72x384xf32, #tpu.memory_space<vmem>>, vector<8x384xf32>
    tpu.vector_store %arg7[%c16, %c0_11], %8 {strides = array<i32>} : memref<72x384xf32, #tpu.memory_space<vmem>>, vector<8x384xf32>,
    %c0_12 = arith.constant 0 : index
    %c0_13 = arith.constant 0 : index
    %c18 = arith.constant 18 : index
    %10 = vector.load %arg4[%c0_12, %c0_13, %c18] : memref<1x8x512xf32, #tpu.memory_space<vmem>>, vector<1x8x384xf32>
    %11 = vector.shape_cast %10 : vector<1x8x384xf32> to vector<8x384xf32>
    %c24 = arith.constant 24 : index
    %c0_14 = arith.constant 0 : index
    %12 = vector.load %arg7[%c24, %c0_14] : memref<72x384xf32, #tpu.memory_space<vmem>>, vector<8x384xf32>
    tpu.vector_store %arg7[%c24, %c0_14], %11 {strides = array<i32>} : memref<72x384xf32, #tpu.memory_space<vmem>>, vector<8x384xf32>,
    %c0_15 = arith.constant 0 : index
    %c0_16 = arith.constant 0 : index
    %c19 = arith.constant 19 : index
    %13 = vector.load %arg4[%c0_15, %c0_16, %c19] : memref<1x8x512xf32, #tpu.memory_space<vmem>>, vector<1x8x384xf32>
    %14 = vector.shape_cast %13 : vector<1x8x384xf32> to vector<8x384xf32>
    %c32 = arith.constant 32 : index
    %c0_17 = arith.constant 0 : index
    %15 = vector.load %arg7[%c32, %c0_17] : memref<72x384xf32, #tpu.memory_space<vmem>>, vector<8x384xf32>
    tpu.vector_store %arg7[%c32, %c0_17], %14 {strides = array<i32>} : memref<72x384xf32, #tpu.memory_space<vmem>>, vector<8x384xf32>,
    %c0_18 = arith.constant 0 : index
    %c0_19 = arith.constant 0 : index
    %c20 = arith.constant 20 : index
    %16 = vector.load %arg4[%c0_18, %c0_19, %c20] : memref<1x8x512xf32, #tpu.memory_space<vmem>>, vector<1x8x384xf32>
    %17 = vector.shape_cast %16 : vector<1x8x384xf32> to vector<8x384xf32>
    %c40 = arith.constant 40 : index
    %c0_20 = arith.constant 0 : index
    %18 = vector.load %arg7[%c40, %c0_20] : memref<72x384xf32, #tpu.memory_space<vmem>>, vector<8x384xf32>
    tpu.vector_store %arg7[%c40, %c0_20], %17 {strides = array<i32>} : memref<72x384xf32, #tpu.memory_space<vmem>>, vector<8x384xf32>,
    %c0_21 = arith.constant 0 : index
    %c0_22 = arith.constant 0 : index
    %c36 = arith.constant 36 : index
    %19 = vector.load %arg4[%c0_21, %c0_22, %c36] : memref<1x8x512xf32, #tpu.memory_space<vmem>>, vector<1x8x384xf32>
    %20 = vector.shape_cast %19 : vector<1x8x384xf32> to vector<8x384xf32>
    %c48 = arith.constant 48 : index
    %c0_23 = arith.constant 0 : index
    %21 = vector.load %arg7[%c48, %c0_23] : memref<72x384xf32, #tpu.memory_space<vmem>>, vector<8x384xf32>
    tpu.vector_store %arg7[%c48, %c0_23], %20 {strides = array<i32>} : memref<72x384xf32, #tpu.memory_space<vmem>>, vector<8x384xf32>,
    %c0_24 = arith.constant 0 : index
    %c0_25 = arith.constant 0 : index
    %c37 = arith.constant 37 : index
    %22 = vector.load %arg4[%c0_24, %c0_25, %c37] : memref<1x8x512xf32, #tpu.memory_space<vmem>>, vector<1x8x384xf32>
    %23 = vector.shape_cast %22 : vector<1x8x384xf32> to vector<8x384xf32>
    %c56 = arith.constant 56 : index
    %c0_26 = arith.constant 0 : index
    %24 = vector.load %arg7[%c56, %c0_26] : memref<72x384xf32, #tpu.memory_space<vmem>>, vector<8x384xf32>
    tpu.vector_store %arg7[%c56, %c0_26], %23 {strides = array<i32>} : memref<72x384xf32, #tpu.memory_space<vmem>>, vector<8x384xf32>,
    %c0_27 = arith.constant 0 : index
    %c0_28 = arith.constant 0 : index
    %c38 = arith.constant 38 : index
    %25 = vector.load %arg4[%c0_27, %c0_28, %c38] : memref<1x8x512xf32, #tpu.memory_space<vmem>>, vector<1x8x384xf32>
    %26 = vector.shape_cast %25 : vector<1x8x384xf32> to vector<8x384xf32>
    %c64 = arith.constant 64 : index
    %c0_29 = arith.constant 0 : index
    %27 = vector.load %arg7[%c64, %c0_29] : memref<72x384xf32, #tpu.memory_space<vmem>>, vector<8x384xf32>
    tpu.vector_store %arg7[%c64, %c0_29], %26 {strides = array<i32>} : memref<72x384xf32, #tpu.memory_space<vmem>>, vector<8x384xf32>,
    %c0_30 = arith.constant 0 : index
    %c0_31 = arith.constant 0 : index
    %28 = vector.load %arg1[%c0_30, %c0_31] : memref<8x72xf32, #tpu.memory_space<vmem>>, vector<8x72xf32>
    %c0_32 = arith.constant 0 : index
    %c0_33 = arith.constant 0 : index
    %29 = vector.load %arg7[%c0_32, %c0_33] : memref<72x384xf32, #tpu.memory_space<vmem>>, vector<72x384xf32>
    %cst = arith.constant dense<0.000000e+00> : vector<8x384xf32>
    %30 = tpu.matmul %28, %29, %cst {dimension_numbers = #tpu.dot_dimension_numbers<[1], [0], [0], [1], [0, 0, 1, 1], [], []>} : vector<8x72xf32>, vector<72x384xf32>, vector<8x384xf32> -> vector<8x384xf32>
    %c16_i32 = arith.constant 16 : i32
    %31 = vector.broadcast %c16_i32 : i32 to vector<1x384xi32>
    %32 = arith.cmpi slt, %0, %31 : vector<1x384xi32>
    %cst_34 = arith.constant 0.000000e+00 : f32
    %33 = vector.shape_cast %32 : vector<1x384xi1> to vector<1x384xi1>
    %34 = vector.broadcast %33 : vector<1x384xi1> to vector<8x384xi1>
    %35 = vector.broadcast %cst_34 : f32 to vector<8x384xf32>
    %36 = arith.select %34, %30, %35 : vector<8x384xi1>, vector<8x384xf32>
    %cst_35 = arith.constant dense<0.000000e+00> : vector<8xf32>
    %37 = vector.multi_reduction <add>, %36, %cst_35 [1] : vector<8x384xf32> to vector<8xf32>
    %38 = vector.shape_cast %37 : vector<8xf32> to vector<8x1xf32>
    %cst_36 = arith.constant 3.906250e-03 : f32
    %39 = vector.broadcast %cst_36 : f32 to vector<8x1xf32>
    %40 = arith.mulf %38, %39 : vector<8x1xf32>
    %41 = arith.mulf %36, %30 : vector<8x384xf32>
    %cst_37 = arith.constant dense<0.000000e+00> : vector<8xf32>
    %42 = vector.multi_reduction <add>, %41, %cst_37 [1] : vector<8x384xf32> to vector<8xf32>
    %43 = vector.shape_cast %42 : vector<8xf32> to vector<8x1xf32>
    %cst_38 = arith.constant 3.906250e-03 : f32
    %44 = vector.broadcast %cst_38 : f32 to vector<8x1xf32>
    %45 = arith.mulf %43, %44 : vector<8x1xf32>
    %46 = arith.mulf %40, %40 : vector<8x1xf32>
    %47 = arith.subf %45, %46 : vector<8x1xf32>
    %cst_39 = arith.constant 0.000000e+00 : f32
    %48 = vector.broadcast %cst_39 : f32 to vector<8x1xf32>
    %49 = arith.maximumf %47, %48 : vector<8x1xf32>
    %50 = vector.broadcast %40 : vector<8x1xf32> to vector<8x384xf32>
    %51 = arith.subf %30, %50 : vector<8x384xf32>
    %cst_40 = arith.constant 9.99999974E-6 : f32
    %52 = vector.broadcast %cst_40 : f32 to vector<8x1xf32>
    %53 = arith.addf %49, %52 : vector<8x1xf32>
    %54 = math.rsqrt %53 : vector<8x1xf32>
    %55 = vector.broadcast %54 : vector<8x1xf32> to vector<8x384xf32>
    %56 = arith.mulf %51, %55 : vector<8x384xf32>
    %cst_41 = arith.constant 0.000000e+00 : f32
    %57 = vector.broadcast %cst_41 : f32 to vector<8x384xf32>
    %58 = arith.maximumf %56, %57 : vector<8x384xf32>
    %c1_i32 = arith.constant 1 : i32
    %59 = tpu.dynamic_rotate %58 by %c1_i32 dim 1 : vector<8x384xf32>, i32 -> vector<8x384xf32>
    %c383_i32 = arith.constant 383 : i32
    %60 = tpu.dynamic_rotate %58 by %c383_i32 dim 1 : vector<8x384xf32>, i32 -> vector<8x384xf32>
    %c3_i32 = arith.constant 3 : i32
    %61 = tpu.dynamic_rotate %58 by %c3_i32 dim 1 : vector<8x384xf32>, i32 -> vector<8x384xf32>
    %c0_i32 = arith.constant 0 : i32
    %62 = vector.broadcast %c0_i32 : i32 to vector<1x384xi32>
    %63 = arith.cmpi eq, %0, %62 : vector<1x384xi32>
    %c17_i32 = arith.constant 17 : i32
    %64 = vector.broadcast %c17_i32 : i32 to vector<1x384xi32>
    %65 = arith.cmpi eq, %0, %64 : vector<1x384xi32>
    %66 = vector.shape_cast %65 : vector<1x384xi1> to vector<1x384xi1>
    %67 = vector.broadcast %66 : vector<1x384xi1> to vector<8x384xi1>
    %68 = arith.select %67, %61, %59 : vector<8x384xi1>, vector<8x384xf32>
    %69 = vector.shape_cast %63 : vector<1x384xi1> to vector<1x384xi1>
    %70 = vector.broadcast %69 : vector<1x384xi1> to vector<8x384xi1>
    %71 = arith.select %70, %60, %68 : vector<8x384xi1>, vector<8x384xf32>
    %c0_42 = arith.constant 0 : index
    %c18_43 = arith.constant 18 : index
    %72 = vector.load %arg6[%c0_42, %c18_43] : memref<8x512xf32, #tpu.memory_space<vmem>>, vector<8x384xf32>
    tpu.vector_store %arg6[%c0_42, %c18_43], %71 {strides = array<i32>} : memref<8x512xf32, #tpu.memory_space<vmem>>, vector<8x384xf32>,
    %c0_44 = arith.constant 0 : index
    %c36_45 = arith.constant 36 : index
    %73 = vector.load %arg6[%c0_44, %c36_45] : memref<8x512xf32, #tpu.memory_space<vmem>>, vector<8x18xf32>
    %c0_46 = arith.constant 0 : index
    %c0_47 = arith.constant 0 : index
    %74 = vector.load %arg6[%c0_46, %c0_47] : memref<8x512xf32, #tpu.memory_space<vmem>>, vector<8x18xf32>
    tpu.vector_store %arg6[%c0_46, %c0_47], %73 {strides = array<i32>} : memref<8x512xf32, #tpu.memory_space<vmem>>, vector<8x18xf32>,
    %c0_48 = arith.constant 0 : index
    %c270 = arith.constant 270 : index
    %75 = vector.load %arg6[%c0_48, %c270] : memref<8x512xf32, #tpu.memory_space<vmem>>, vector<8x18xf32>
    %c0_49 = arith.constant 0 : index
    %c306 = arith.constant 306 : index
    %76 = vector.load %arg6[%c0_49, %c306] : memref<8x512xf32, #tpu.memory_space<vmem>>, vector<8x18xf32>
    tpu.vector_store %arg6[%c0_49, %c306], %75 {strides = array<i32>} : memref<8x512xf32, #tpu.memory_space<vmem>>, vector<8x18xf32>,
    %c0_50 = arith.constant 0 : index
    %c0_51 = arith.constant 0 : index
    %77 = vector.load %arg6[%c0_50, %c0_51] : memref<8x512xf32, #tpu.memory_space<vmem>>, vector<8x384xf32>
    %c0_52 = arith.constant 0 : index
    %c0_53 = arith.constant 0 : index
    %78 = vector.load %arg7[%c0_52, %c0_53] : memref<72x384xf32, #tpu.memory_space<vmem>>, vector<8x384xf32>
    tpu.vector_store %arg7[%c0_52, %c0_53], %77 {strides = array<i32>} : memref<72x384xf32, #tpu.memory_space<vmem>>, vector<8x384xf32>,
    %c0_54 = arith.constant 0 : index
    %c1_55 = arith.constant 1 : index
    %79 = vector.load %arg6[%c0_54, %c1_55] : memref<8x512xf32, #tpu.memory_space<vmem>>, vector<8x384xf32>
    %c8_56 = arith.constant 8 : index
    %c0_57 = arith.constant 0 : index
    %80 = vector.load %arg7[%c8_56, %c0_57] : memref<72x384xf32, #tpu.memory_space<vmem>>, vector<8x384xf32>
    tpu.vector_store %arg7[%c8_56, %c0_57], %79 {strides = array<i32>} : memref<72x384xf32, #tpu.memory_space<vmem>>, vector<8x384xf32>,
    %c0_58 = arith.constant 0 : index
    %c2_59 = arith.constant 2 : index
    %81 = vector.load %arg6[%c0_58, %c2_59] : memref<8x512xf32, #tpu.memory_space<vmem>>, vector<8x384xf32>
    %c16_60 = arith.constant 16 : index
    %c0_61 = arith.constant 0 : index
    %82 = vector.load %arg7[%c16_60, %c0_61] : memref<72x384xf32, #tpu.memory_space<vmem>>, vector<8x384xf32>
    tpu.vector_store %arg7[%c16_60, %c0_61], %81 {strides = array<i32>} : memref<72x384xf32, #tpu.memory_space<vmem>>, vector<8x384xf32>,
    %c0_62 = arith.constant 0 : index
    %c18_63 = arith.constant 18 : index
    %83 = vector.load %arg6[%c0_62, %c18_63] : memref<8x512xf32, #tpu.memory_space<vmem>>, vector<8x384xf32>
    %c24_64 = arith.constant 24 : index
    %c0_65 = arith.constant 0 : index
    %84 = vector.load %arg7[%c24_64, %c0_65] : memref<72x384xf32, #tpu.memory_space<vmem>>, vector<8x384xf32>
    tpu.vector_store %arg7[%c24_64, %c0_65], %83 {strides = array<i32>} : memref<72x384xf32, #tpu.memory_space<vmem>>, vector<8x384xf32>,
    %c0_66 = arith.constant 0 : index
    %c19_67 = arith.constant 19 : index
    %85 = vector.load %arg6[%c0_66, %c19_67] : memref<8x512xf32, #tpu.memory_space<vmem>>, vector<8x384xf32>
    %c32_68 = arith.constant 32 : index
    %c0_69 = arith.constant 0 : index
    %86 = vector.load %arg7[%c32_68, %c0_69] : memref<72x384xf32, #tpu.memory_space<vmem>>, vector<8x384xf32>
    tpu.vector_store %arg7[%c32_68, %c0_69], %85 {strides = array<i32>} : memref<72x384xf32, #tpu.memory_space<vmem>>, vector<8x384xf32>,
    %c0_70 = arith.constant 0 : index
    %c20_71 = arith.constant 20 : index
    %87 = vector.load %arg6[%c0_70, %c20_71] : memref<8x512xf32, #tpu.memory_space<vmem>>, vector<8x384xf32>
    %c40_72 = arith.constant 40 : index
    %c0_73 = arith.constant 0 : index
    %88 = vector.load %arg7[%c40_72, %c0_73] : memref<72x384xf32, #tpu.memory_space<vmem>>, vector<8x384xf32>
    tpu.vector_store %arg7[%c40_72, %c0_73], %87 {strides = array<i32>} : memref<72x384xf32, #tpu.memory_space<vmem>>, vector<8x384xf32>,
    %c0_74 = arith.constant 0 : index
    %c36_75 = arith.constant 36 : index
    %89 = vector.load %arg6[%c0_74, %c36_75] : memref<8x512xf32, #tpu.memory_space<vmem>>, vector<8x384xf32>
    %c48_76 = arith.constant 48 : index
    %c0_77 = arith.constant 0 : index
    %90 = vector.load %arg7[%c48_76, %c0_77] : memref<72x384xf32, #tpu.memory_space<vmem>>, vector<8x384xf32>
    tpu.vector_store %arg7[%c48_76, %c0_77], %89 {strides = array<i32>} : memref<72x384xf32, #tpu.memory_space<vmem>>, vector<8x384xf32>,
    %c0_78 = arith.constant 0 : index
    %c37_79 = arith.constant 37 : index
    %91 = vector.load %arg6[%c0_78, %c37_79] : memref<8x512xf32, #tpu.memory_space<vmem>>, vector<8x384xf32>
    %c56_80 = arith.constant 56 : index
    %c0_81 = arith.constant 0 : index
    %92 = vector.load %arg7[%c56_80, %c0_81] : memref<72x384xf32, #tpu.memory_space<vmem>>, vector<8x384xf32>
    tpu.vector_store %arg7[%c56_80, %c0_81], %91 {strides = array<i32>} : memref<72x384xf32, #tpu.memory_space<vmem>>, vector<8x384xf32>,
    %c0_82 = arith.constant 0 : index
    %c38_83 = arith.constant 38 : index
    %93 = vector.load %arg6[%c0_82, %c38_83] : memref<8x512xf32, #tpu.memory_space<vmem>>, vector<8x384xf32>
    %c64_84 = arith.constant 64 : index
    %c0_85 = arith.constant 0 : index
    %94 = vector.load %arg7[%c64_84, %c0_85] : memref<72x384xf32, #tpu.memory_space<vmem>>, vector<8x384xf32>
    tpu.vector_store %arg7[%c64_84, %c0_85], %93 {strides = array<i32>} : memref<72x384xf32, #tpu.memory_space<vmem>>, vector<8x384xf32>,
    %c0_86 = arith.constant 0 : index
    %c0_87 = arith.constant 0 : index
    %c19_88 = arith.constant 19 : index
    %95 = vector.load %arg4[%c0_86, %c0_87, %c19_88] : memref<1x8x512xf32, #tpu.memory_space<vmem>>, vector<1x8x384xf32>
    %96 = vector.shape_cast %95 : vector<1x8x384xf32> to vector<8x384xf32>
    %c0_89 = arith.constant 0 : index
    %c0_90 = arith.constant 0 : index
    %97 = vector.load %arg2[%c0_89, %c0_90] : memref<8x72xf32, #tpu.memory_space<vmem>>, vector<8x72xf32>
    %c0_91 = arith.constant 0 : index
    %c0_92 = arith.constant 0 : index
    %98 = vector.load %arg7[%c0_91, %c0_92] : memref<72x384xf32, #tpu.memory_space<vmem>>, vector<72x384xf32>
    %cst_93 = arith.constant dense<0.000000e+00> : vector<8x384xf32>
    %99 = tpu.matmul %97, %98, %cst_93 {dimension_numbers = #tpu.dot_dimension_numbers<[1], [0], [0], [1], [0, 0, 1, 1], [], []>} : vector<8x72xf32>, vector<72x384xf32>, vector<8x384xf32> -> vector<8x384xf32>
    %100 = arith.addf %96, %99 : vector<8x384xf32>
    %c0_94 = arith.constant 0 : index
    %c0_95 = arith.constant 0 : index
    %c0_96 = arith.constant 0 : index
    %101 = vector.load %arg5[%c0_94, %c0_95, %c0_96] : memref<1x8x384xf32, #tpu.memory_space<vmem>>, vector<1x8x384xf32>
    %102 = vector.shape_cast %101 : vector<1x8x384xf32> to vector<8x384xf32>
    %103 = vector.shape_cast %100 : vector<8x384xf32> to vector<1x8x384xf32>
    tpu.vector_store %arg5[%c0_94, %c0_95, %c0_96], %103 {strides = array<i32>} : memref<1x8x384xf32, #tpu.memory_space<vmem>>, vector<1x8x384xf32>,
    return
  }
  func.func @transform_0(%arg0: i32) -> (i32, i32) {
    %c0_i32 = arith.constant 0 : i32
    %c0_i32_0 = arith.constant 0 : i32
    %c0_i32_1 = arith.constant 0 : i32
    return %c0_i32, %c0_i32_0 : i32, i32
  }
  func.func @transform_1(%arg0: i32) -> (i32, i32) {
    %c0_i32 = arith.constant 0 : i32
    %c0_i32_0 = arith.constant 0 : i32
    %c0_i32_1 = arith.constant 0 : i32
    return %c0_i32, %c0_i32_0 : i32, i32
  }
  func.func @transform_2(%arg0: i32) -> (i32, i32) {
    %c0_i32 = arith.constant 0 : i32
    %c0_i32_0 = arith.constant 0 : i32
    %c0_i32_1 = arith.constant 0 : i32
    return %c0_i32, %c0_i32_0 : i32, i32
  }
  func.func @transform_3(%arg0: i32) -> (i32, i32, i32) {
    %c0_i32 = arith.constant 0 : i32
    %c0_i32_0 = arith.constant 0 : i32
    %c0_i32_1 = arith.constant 0 : i32
    return %arg0, %c0_i32, %c0_i32_0 : i32, i32, i32
  }
  func.func @transform_4(%arg0: i32) -> (i32, i32, i32) {
    %c0_i32 = arith.constant 0 : i32
    %c0_i32_0 = arith.constant 0 : i32
    %c0_i32_1 = arith.constant 0 : i32
    return %arg0, %c0_i32, %c0_i32_0 : i32, i32, i32
  }
}

</mosaic_0001>

<llo_original>
// kernel: tpu_custom_call.1
$region0: #{tpu_custom_call.1}
  #allocation0 [shape = 'u32[]', space=smem, size = 0x4, offset = 0x4, fixed_abs, tag = 'smem constant byte address 0x4 - core index']
  #allocation1 [shape = 'u32[144,128]{1,0:T(1,128)}', space=vmem, size = 0x12000, scoped, tag = 'internal scratch']
  #allocation2 [shape = 'f32[8,512]{1,0:T(8,128)}', space=vmem, size = 0x4000, scoped, tag = 'scratch operand']
  #allocation3 [shape = 'f32[72,384]{1,0:T(8,128)}', space=vmem, size = 0x1b000, scoped, tag = 'scratch operand']
  %s0 = inlined_call_operand.hbm [shape: f32[8,72], index: 0, kind: input, shape index: {}]
  %s1 = inlined_call_operand.hbm [shape: f32[8,72], index: 1, kind: input, shape index: {}]
  %s2 = inlined_call_operand.vmem [shape: s32[1,384], index: 2, kind: input, shape index: {}]
  %s3 = inlined_call_operand.hbm [shape: f32[2,8,512], index: 3, kind: input, shape index: {}]
  %s4 = inlined_call_operand.hbm [shape: f32[2,8,384], index: 4, kind: output, shape index: {}]
  %s5 = sld [smem:[#allocation0]]
  $region61: #{tpu_custom_call.1} parent=0
    _
  %s7 = ssub.s32 1, %s5
  %s8 = scalar_select 0, %s7, %s5
  $region1: #{tpu_custom_call.1} parent=0
    #allocation4 [shape = 'u8[4096]{0}', space=vmem, size = 0x1000, scoped, tag = 'input window, operand 0, single buffered']
    #allocation5 [shape = 's32[2]{0}', space=sflag, size = 0x8, scoped, tag = 'scoped memory for tpu_custom_call.1']
    #allocation6 [shape = 's32[2]{0}', space=sflag, size = 0x8, scoped, tag = 'scoped memory for tpu_custom_call.1']
    #allocation7 [shape = 'u8[4096]{0}', space=vmem, size = 0x1000, scoped, tag = 'input window, operand 1, single buffered']
    #allocation8 [shape = 's32[1]{0}', space=sflag, size = 0x4, scoped, tag = 'scoped memory for tpu_custom_call.1']
    #allocation9 [shape = 'u8[32768]{0}', space=vmem, size = 0x8000, scoped, tag = 'input window, operand 3']
    #allocation10 [shape = 'u8[24576]{0}', space=vmem, size = 0x6000, scoped, tag = 'output window, operand 0']
    %9 = vsyncpa [#allocation5], 0
    %10 = vsyncpa [#allocation8], 0
    %11 = vsyncpa [#allocation6], 0
    %s12 = scalar_lea.sflag [#allocation6], 1
    %13 = vsyncpa %s12, 0
    loop: start=0, step=1, limit=4
    $region2: #{tpu_custom_call.1} parent=1 // loop_pre_header
      _
    $region3: #{tpu_custom_call.1} parent=1 // loop_header
      %s15 = sphi 0, %s19
      %p16 = scmp.ge.s32.totalorder %s15, 4
      %s23 = sphi 0, %s23
      %s25 = sphi 0, %s23
      %s26 = sphi 0, %s25
      %s40 = sphi 0, %s26
      %s44 = sphi 0, %s44
      %s46 = sphi 0, %s44
      %s47 = sphi 0, %s46
      %s61 = sphi 0, %s47
      %s65 = sphi 0, %s65
      %s67 = sphi 0, %s65
      %s68 = sphi 0, %s67
      %s82 = sphi 0, %s68
      %s88 = sphi 0, %s90
      %s91 = sphi 0, %s88
      %s92 = sphi 0, %s91
      %s108 = sphi 0, %s92
      %s114 = sphi 0, %s116
      %s117 = sphi 0, %s114
      %s118 = sphi 0, %s117
      %s134 = sphi 0, %s118
    $region4: #{tpu_custom_call.1} parent=1 // loop_header_branch
      %18 = sbr.rel (%p16) target = $region8
    $region5: #{tpu_custom_call.1} parent=1 // loop_body
      %s20 = ssub.s32 %s15, 1
      %s21 = ssub.s32 %s15, 2
      %s22 = sadd.s32 %s15, 1
      %s24 = sadd.s32 %s23, 1
      %p27 = scmp.eq.s32.totalorder %s15, 1
      %p28 = scmp.ne.s32.totalorder %s23, %s25
      %p29 = scmp.eq.s32.totalorder %s15, 0
      %p30 = por %p28, %p29
      %p31 = scmp.ne.s32.totalorder %s23, %s25
      %p32 = scmp.eq.s32.totalorder %s20, 1
      %p33 = por %p31, %p32
      %p34 = scmp.ne.s32.totalorder %s25, %s26
      %p35 = scmp.eq.s32.totalorder %s20, 0
      %p36 = por %p34, %p35
      %p37 = scmp.ne.s32.totalorder %s25, %s26
      %p38 = scmp.eq.s32.totalorder %s21, 1
      %p39 = por %p37, %p38
      %p41 = scmp.ne.s32.totalorder %s26, %s40
      %p42 = scmp.eq.s32.totalorder %s21, 0
      %p43 = por %p41, %p42
      %s45 = sadd.s32 %s44, 1
      %p48 = scmp.eq.s32.totalorder %s15, 1
      %p49 = scmp.ne.s32.totalorder %s44, %s46
      %p50 = scmp.eq.s32.totalorder %s15, 0
      %p51 = por %p49, %p50
      %p52 = scmp.ne.s32.totalorder %s44, %s46
      %p53 = scmp.eq.s32.totalorder %s20, 1
      %p54 = por %p52, %p53
      %p55 = scmp.ne.s32.totalorder %s46, %s47
      %p56 = scmp.eq.s32.totalorder %s20, 0
      %p57 = por %p55, %p56
      %p58 = scmp.ne.s32.totalorder %s46, %s47
      %p59 = scmp.eq.s32.totalorder %s21, 1
      %p60 = por %p58, %p59
      %p62 = scmp.ne.s32.totalorder %s47, %s61
      %p63 = scmp.eq.s32.totalorder %s21, 0
      %p64 = por %p62, %p63
      %s66 = sadd.s32 %s65, 1
      %p69 = scmp.eq.s32.totalorder %s15, 1
      %p70 = scmp.ne.s32.totalorder %s65, %s67
      %p71 = scmp.eq.s32.totalorder %s15, 0
      %p72 = por %p70, %p71
      %p73 = scmp.ne.s32.totalorder %s65, %s67
      %p74 = scmp.eq.s32.totalorder %s20, 1
      %p75 = por %p73, %p74
      %p76 = scmp.ne.s32.totalorder %s67, %s68
      %p77 = scmp.eq.s32.totalorder %s20, 0
      %p78 = por %p76, %p77
      %p79 = scmp.ne.s32.totalorder %s67, %s68
      %p80 = scmp.eq.s32.totalorder %s21, 1
      %p81 = por %p79, %p80
      %p83 = scmp.ne.s32.totalorder %s68, %s82
      %p84 = scmp.eq.s32.totalorder %s21, 0
      %p85 = por %p83, %p84
      %s86 = ssub.s32 %s15, %s22
      %p87 = scmp.eq.s32.totalorder %s86, 0
      %s89 = sadd.s32 %s88, 1
      %s90 = scalar_select %p87, %s88, %s89
      %p93 = pneg %p87
      %p94 = scmp.eq.s32.totalorder %s15, 1
      %p95 = por %p93, %p94
      %p96 = scmp.ne.s32.totalorder %s88, %s91
      %p97 = scmp.eq.s32.totalorder %s15, 0
      %p98 = por %p96, %p97
      %p99 = scmp.ne.s32.totalorder %s88, %s91
      %p100 = scmp.eq.s32.totalorder %s20, 1
      %p101 = por %p99, %p100
      %p102 = scmp.ne.s32.totalorder %s91, %s92
      %p103 = scmp.eq.s32.totalorder %s20, 0
      %p104 = por %p102, %p103
      %p105 = scmp.ne.s32.totalorder %s91, %s92
      %p106 = scmp.eq.s32.totalorder %s21, 1
      %p107 = por %p105, %p106
      %p109 = scmp.ne.s32.totalorder %s92, %s108
      %p110 = scmp.eq.s32.totalorder %s21, 0
      %p111 = por %p109, %p110
      %s112 = ssub.s32 %s15, %s22
      %p113 = scmp.eq.s32.totalorder %s112, 0
      %s115 = sadd.s32 %s114, 1
      %s116 = scalar_select %p113, %s114, %s115
      %p119 = pneg %p113
      %p120 = scmp.eq.s32.totalorder %s15, 1
      %p121 = por %p119, %p120
      %p122 = scmp.ne.s32.totalorder %s114, %s117
      %p123 = scmp.eq.s32.totalorder %s15, 0
      %p124 = por %p122, %p123
      %p125 = scmp.ne.s32.totalorder %s114, %s117
      %p126 = scmp.eq.s32.totalorder %s20, 1
      %p127 = por %p125, %p126
      %p128 = scmp.ne.s32.totalorder %s117, %s118
      %p129 = scmp.eq.s32.totalorder %s20, 0
      %p130 = por %p128, %p129
      %p131 = scmp.ne.s32.totalorder %s117, %s118
      %p132 = scmp.eq.s32.totalorder %s21, 1
      %p133 = por %p131, %p132
      %p135 = scmp.ne.s32.totalorder %s118, %s134
      %p136 = scmp.eq.s32.totalorder %s21, 0
      %p137 = por %p135, %p136
      %p138 = scmp.le.s32.totalorder 1, %s15
      %p139 = scmp.lt.s32.totalorder %s15, 3
      %p140 = pnand %p138, %p139
      %p141 = pneg %p140
      // Predicated region
      $region9: #{tpu_custom_call.1} parent=5 // pred_check
        _
      $region10: #{tpu_custom_call.1} parent=5 // pred_check_branch
        %143 = sbr.rel (%p140) target = $region12
      $region11: #{tpu_custom_call.1} parent=5 // pred_region
        %s144 = ssub.s32 %s15, 1
        // Predicated region
        $region13: #{tpu_custom_call.1} parent=11 // pred_check
          %p145 = pneg %p36
        $region14: #{tpu_custom_call.1} parent=11 // pred_check_branch
          %147 = sbr.rel (%p145) target = $region16
        $region15: #{tpu_custom_call.1} parent=11 // pred_region
          %s149 = ssub.s32 128, 128
          %150 = vsyncadd [#allocation5], %s149
          %s152 = sshll.u32 [#allocation4], 4
          %s153 = int_to_ptr.vmem [resolvable:$true] %s152
          %155 = dma.hbm_to_vmem [thread:$0]  %s0, 128, %s153, [#allocation5]
        $region16: #{tpu_custom_call.1} parent=11 // pred_fallthru
          _
        // Predicated region
        $region17: #{tpu_custom_call.1} parent=11 // pred_check
          %p156 = pneg %p57
        $region18: #{tpu_custom_call.1} parent=11 // pred_check_branch
          %158 = sbr.rel (%p156) target = $region20
        $region19: #{tpu_custom_call.1} parent=11 // pred_region
          %s160 = ssub.s32 128, 128
          %161 = vsyncadd [#allocation8], %s160
          %s163 = sshll.u32 [#allocation7], 4
          %s164 = int_to_ptr.vmem [resolvable:$true] %s163
          %166 = dma.hbm_to_vmem [thread:$0]  %s1, 128, %s164, [#allocation8]
        $region20: #{tpu_custom_call.1} parent=11 // pred_fallthru
          _
        // Predicated region
        $region21: #{tpu_custom_call.1} parent=11 // pred_check
          %p167 = pneg %p78
        $region22: #{tpu_custom_call.1} parent=11 // pred_check_branch
          %169 = sbr.rel (%p167) target = $region24
        $region23: #{tpu_custom_call.1} parent=11 // pred_region
          _
        $region24: #{tpu_custom_call.1} parent=11 // pred_fallthru
          _
      $region12: #{tpu_custom_call.1} parent=5 // pred_fallthru
        _
      %p170 = scmp.lt.s32.totalorder %s15, 2
      // Predicated region
      $region25: #{tpu_custom_call.1} parent=5 // pred_check
        %p171 = pneg %p170
      $region26: #{tpu_custom_call.1} parent=5 // pred_check_branch
        %173 = sbr.rel (%p171) target = $region28
      $region27: #{tpu_custom_call.1} parent=5 // pred_region
        // Predicated region
        $region29: #{tpu_custom_call.1} parent=27 // pred_check
          %p174 = pneg %p98
        $region30: #{tpu_custom_call.1} parent=27 // pred_check_branch
          %176 = sbr.rel (%p174) target = $region32
        $region31: #{tpu_custom_call.1} parent=27 // pred_region
          %s177 = sand.u32 %s15, 1
          %s178 = scalar_lea.sflag [#allocation5], %s177
          %s179 = sand.u32 %s88, 1
          %s180 = smul.addr %s179, 32
          %s181 = scalar_lea.vmem [#allocation9], %s180
          %s183 = ssub.s32 512, 512
          %184 = vsyncadd %s178, %s183
          %s185 = smul.addr %s15, 4
          %s186 = smul.addr %s185, 128
          %s187 = scalar_lea.hbm %s3, %s186
          %s189 = sshll.u32 %s181, 4
          %s190 = int_to_ptr.vmem [resolvable:$true] %s189
          %192 = dma.hbm_to_vmem [thread:$0]  %s187, 512, %s190, %s178
        $region32: #{tpu_custom_call.1} parent=27 // pred_fallthru
          _
      $region28: #{tpu_custom_call.1} parent=5 // pred_fallthru
        _
      %p193 = scmp.le.s32.totalorder 1, %s15
      %p194 = scmp.lt.s32.totalorder %s15, 3
      %p195 = pnand %p193, %p194
      %p196 = pneg %p195
      // Predicated region
      $region33: #{tpu_custom_call.1} parent=5 // pred_check
        _
      $region34: #{tpu_custom_call.1} parent=5 // pred_check_branch
        %198 = sbr.rel (%p195) target = $region36
      $region35: #{tpu_custom_call.1} parent=5 // pred_region
        %s199 = ssub.s32 %s15, 1
        // Predicated region
        $region37: #{tpu_custom_call.1} parent=35 // pred_check
          %p200 = pneg %p36
        $region38: #{tpu_custom_call.1} parent=35 // pred_check_branch
          %202 = sbr.rel (%p200) target = $region40
        $region39: #{tpu_custom_call.1} parent=35 // pred_region
          %203 = dma.done [#allocation5], 128
        $region40: #{tpu_custom_call.1} parent=35 // pred_fallthru
          _
        // Predicated region
        $region41: #{tpu_custom_call.1} parent=35 // pred_check
          %p204 = pneg %p57
        $region42: #{tpu_custom_call.1} parent=35 // pred_check_branch
          %206 = sbr.rel (%p204) target = $region44
        $region43: #{tpu_custom_call.1} parent=35 // pred_region
          %207 = dma.done [#allocation8], 128
        $region44: #{tpu_custom_call.1} parent=35 // pred_fallthru
          _
        %s208 = sand.u32 %s20, 1
        %s209 = scalar_lea.sflag [#allocation5], %s208
        %s210 = sand.u32 %s91, 1
        %s211 = smul.addr %s210, 32
        %s212 = scalar_lea.vmem [#allocation9], %s211
        // Predicated region
        $region45: #{tpu_custom_call.1} parent=35 // pred_check
          %p213 = pneg %p104
        $region46: #{tpu_custom_call.1} parent=35 // pred_check_branch
          %215 = sbr.rel (%p213) target = $region48
        $region47: #{tpu_custom_call.1} parent=35 // pred_region
          %216 = dma.done %s209, 512
        $region48: #{tpu_custom_call.1} parent=35 // pred_fallthru
          _
        %p217 = pneg %p36
        %p218 = pneg %p33
        %p219 = pneg %p57
        %p220 = pneg %p54
        %p221 = pneg %p78
        %p222 = pneg %p75
        %s223 = sand.u32 %s20, 1
        %s224 = scalar_lea.sflag [#allocation5], %s223
        %s225 = sand.u32 %s91, 1
        %s226 = smul.addr %s225, 32
        %s227 = scalar_lea.vmem [#allocation9], %s226
        %p228 = pneg %p104
        %p229 = pneg %p101
        %p230 = pneg %p130
        %p231 = pneg %p127
        %s232 = sand.u32 %s117, 1
        %s233 = scalar_lea.sflag [#allocation6], %s232
        %s234 = sand.u32 %s117, 1
        %s235 = smul.addr %s234, 24
        %s236 = scalar_lea.vmem [#allocation10], %s235
        %v237 = vld [vmem:[%s2] sm:$0x7]
        %v238 = vld [vmem:[%s212] sm:$0xff]
        %v239 = vld [vmem:[%s212 + $0x8] sm:$0xff]
        %v240 = vld [vmem:[%s212 + $0x10] sm:$0xff]
        %241 = vst [vmem:[#allocation3] sm:$0xff] %v238
        %242 = vst [vmem:[#allocation3 + $0x8] sm:$0xff] %v239
        %243 = vst [vmem:[#allocation3 + $0x10] sm:$0xff] %v240
        %v244 = vld [vmem:[%s212] sm:$0xff]
        %v245 = vld [vmem:[%s212 + $0x8] sm:$0xff]
        %v246 = vld [vmem:[%s212 + $0x10] sm:$0xff]
        %v247 = vld [vmem:[%s212 + $0x18] sm:$0xff]
        %252 = vrot.lane.b32.xlu0 %v244, 127
        %v253 = vpop.permute.xlu0 %252
        %254 = vrot.lane.b32.xlu0 %v245, 127
        %v255 = vpop.permute.xlu0 %254
        %256 = vrot.lane.b32.xlu0 %v246, 127
        %v257 = vpop.permute.xlu0 %256
        %258 = vrot.lane.b32.xlu0 %v247, 127
        %v259 = vpop.permute.xlu0 %258
        %vm260 = vcmask 1039360
        %v261 = vsel %vm260, %v253, %v255
        %v262 = vsel %vm260, %v255, %v257
        %v263 = vsel %vm260, %v257, %v259
        %267 = vst [vmem:[#allocation3 + $0x18] sm:$0xff] %v261
        %268 = vst [vmem:[#allocation3 + $0x20] sm:$0xff] %v262
        %269 = vst [vmem:[#allocation3 + $0x28] sm:$0xff] %v263
        %v270 = vld [vmem:[%s212] sm:$0xff]
        %v271 = vld [vmem:[%s212 + $0x8] sm:$0xff]
        %v272 = vld [vmem:[%s212 + $0x10] sm:$0xff]
        %v273 = vld [vmem:[%s212 + $0x18] sm:$0xff]
        %278 = vrot.lane.b32.xlu0 %v270, 126
        %v279 = vpop.permute.xlu0 %278
        %280 = vrot.lane.b32.xlu0 %v271, 126
        %v281 = vpop.permute.xlu0 %280
        %282 = vrot.lane.b32.xlu0 %v272, 126
        %v283 = vpop.permute.xlu0 %282
        %284 = vrot.lane.b32.xlu0 %v273, 126
        %v285 = vpop.permute.xlu0 %284
        %vm286 = vcmask 1031168
        %v287 = vsel %vm286, %v279, %v281
        %v288 = vsel %vm286, %v281, %v283
        %v289 = vsel %vm286, %v283, %v285
        %293 = vst [vmem:[#allocation3 + $0x30] sm:$0xff] %v287
        %294 = vst [vmem:[#allocation3 + $0x38] sm:$0xff] %v288
        %295 = vst [vmem:[#allocation3 + $0x40] sm:$0xff] %v289
        %v296 = vld [vmem:[%s212] sm:$0xff]
        %v297 = vld [vmem:[%s212 + $0x8] sm:$0xff]
        %v298 = vld [vmem:[%s212 + $0x10] sm:$0xff]
        %v299 = vld [vmem:[%s212 + $0x18] sm:$0xff]
        %304 = vrot.lane.b32.xlu0 %v296, 110
        %v305 = vpop.permute.xlu0 %304
        %306 = vrot.lane.b32.xlu0 %v297, 110
        %v307 = vpop.permute.xlu0 %306
        %308 = vrot.lane.b32.xlu0 %v298, 110
        %v309 = vpop.permute.xlu0 %308
        %310 = vrot.lane.b32.xlu0 %v299, 110
        %v311 = vpop.permute.xlu0 %310
        %vm312 = vcmask 900096
        %v313 = vsel %vm312, %v305, %v307
        %v314 = vsel %vm312, %v307, %v309
        %v315 = vsel %vm312, %v309, %v311
        %319 = vst [vmem:[#allocation3 + $0x48] sm:$0xff] %v313
        %320 = vst [vmem:[#allocation3 + $0x50] sm:$0xff] %v314
        %321 = vst [vmem:[#allocation3 + $0x58] sm:$0xff] %v315
        %v322 = vld [vmem:[%s212] sm:$0xff]
        %v323 = vld [vmem:[%s212 + $0x8] sm:$0xff]
        %v324 = vld [vmem:[%s212 + $0x10] sm:$0xff]
        %v325 = vld [vmem:[%s212 + $0x18] sm:$0xff]
        %330 = vrot.lane.b32.xlu0 %v322, 109
        %v331 = vpop.permute.xlu0 %330
        %332 = vrot.lane.b32.xlu0 %v323, 109
        %v333 = vpop.permute.xlu0 %332
        %334 = vrot.lane.b32.xlu0 %v324, 109
        %v335 = vpop.permute.xlu0 %334
        %336 = vrot.lane.b32.xlu0 %v325, 109
        %v337 = vpop.permute.xlu0 %336
        %vm338 = vcmask 891904
        %v339 = vsel %vm338, %v331, %v333
        %v340 = vsel %vm338, %v333, %v335
        %v341 = vsel %vm338, %v335, %v337
        %345 = vst [vmem:[#allocation3 + $0x60] sm:$0xff] %v339
        %346 = vst [vmem:[#allocation3 + $0x68] sm:$0xff] %v340
        %347 = vst [vmem:[#allocation3 + $0x70] sm:$0xff] %v341
        %v348 = vld [vmem:[%s212] sm:$0xff]
        %v349 = vld [vmem:[%s212 + $0x8] sm:$0xff]
        %v350 = vld [vmem:[%s212 + $0x10] sm:$0xff]
        %v351 = vld [vmem:[%s212 + $0x18] sm:$0xff]
        %356 = vrot.lane.b32.xlu0 %v348, 108
        %v357 = vpop.permute.xlu0 %356
        %358 = vrot.lane.b32.xlu0 %v349, 108
        %v359 = vpop.permute.xlu0 %358
        %360 = vrot.lane.b32.xlu0 %v350, 108
        %v361 = vpop.permute.xlu0 %360
        %362 = vrot.lane.b32.xlu0 %v351, 108
        %v363 = vpop.permute.xlu0 %362
        %vm364 = vcmask 883712
        %v365 = vsel %vm364, %v357, %v359
        %v366 = vsel %vm364, %v359, %v361
        %v367 = vsel %vm364, %v361, %v363
        %371 = vst [vmem:[#allocation3 + $0x78] sm:$0xff] %v365
        %372 = vst [vmem:[#allocation3 + $0x80] sm:$0xff] %v366
        %373 = vst [vmem:[#allocation3 + $0x88] sm:$0xff] %v367
        %v374 = vld [vmem:[%s212] sm:$0xff]
        %v375 = vld [vmem:[%s212 + $0x8] sm:$0xff]
        %v376 = vld [vmem:[%s212 + $0x10] sm:$0xff]
        %v377 = vld [vmem:[%s212 + $0x18] sm:$0xff]
        %382 = vrot.lane.b32.xlu0 %v374, 92
        %v383 = vpop.permute.xlu0 %382
        %384 = vrot.lane.b32.xlu0 %v375, 92
        %v385 = vpop.permute.xlu0 %384
        %386 = vrot.lane.b32.xlu0 %v376, 92
        %v387 = vpop.permute.xlu0 %386
        %388 = vrot.lane.b32.xlu0 %v377, 92
        %v389 = vpop.permute.xlu0 %388
        %vm390 = vcmask 752640
        %v391 = vsel %vm390, %v383, %v385
        %v392 = vsel %vm390, %v385, %v387
        %v393 = vsel %vm390, %v387, %v389
        %397 = vst [vmem:[#allocation3 + $0x90] sm:$0xff] %v391
        %398 = vst [vmem:[#allocation3 + $0x98] sm:$0xff] %v392
        %399 = vst [vmem:[#allocation3 + $0xa0] sm:$0xff] %v393
        %v400 = vld [vmem:[%s212] sm:$0xff]
        %v401 = vld [vmem:[%s212 + $0x8] sm:$0xff]
        %v402 = vld [vmem:[%s212 + $0x10] sm:$0xff]
        %v403 = vld [vmem:[%s212 + $0x18] sm:$0xff]
        %408 = vrot.lane.b32.xlu0 %v400, 91
        %v409 = vpop.permute.xlu0 %408
        %410 = vrot.lane.b32.xlu0 %v401, 91
        %v411 = vpop.permute.xlu0 %410
        %412 = vrot.lane.b32.xlu0 %v402, 91
        %v413 = vpop.permute.xlu0 %412
        %414 = vrot.lane.b32.xlu0 %v403, 91
        %v415 = vpop.permute.xlu0 %414
        %vm416 = vcmask 744448
        %v417 = vsel %vm416, %v409, %v411
        %v418 = vsel %vm416, %v411, %v413
        %v419 = vsel %vm416, %v413, %v415
        %423 = vst [vmem:[#allocation3 + $0xa8] sm:$0xff] %v417
        %424 = vst [vmem:[#allocation3 + $0xb0] sm:$0xff] %v418
        %425 = vst [vmem:[#allocation3 + $0xb8] sm:$0xff] %v419
        %v426 = vld [vmem:[%s212] sm:$0xff]
        %v427 = vld [vmem:[%s212 + $0x8] sm:$0xff]
        %v428 = vld [vmem:[%s212 + $0x10] sm:$0xff]
        %v429 = vld [vmem:[%s212 + $0x18] sm:$0xff]
        %434 = vrot.lane.b32.xlu0 %v426, 90
        %v435 = vpop.permute.xlu0 %434
        %436 = vrot.lane.b32.xlu0 %v427, 90
        %v437 = vpop.permute.xlu0 %436
        %438 = vrot.lane.b32.xlu0 %v428, 90
        %v439 = vpop.permute.xlu0 %438
        %440 = vrot.lane.b32.xlu0 %v429, 90
        %v441 = vpop.permute.xlu0 %440
        %vm442 = vcmask 736256
        %v443 = vsel %vm442, %v435, %v437
        %v444 = vsel %vm442, %v437, %v439
        %v445 = vsel %vm442, %v439, %v441
        %449 = vst [vmem:[#allocation3 + $0xc0] sm:$0xff] %v443
        %450 = vst [vmem:[#allocation3 + $0xc8] sm:$0xff] %v444
        %451 = vst [vmem:[#allocation3 + $0xd0] sm:$0xff] %v445
        %v452 = vld [vmem:[#allocation4] sm:$0xff]
        %v453 = vld [vmem:[#allocation3] sm:$0xff]
        %v454 = vld [vmem:[#allocation3 + $0x8] sm:$0xff]
        %v455 = vld [vmem:[#allocation3 + $0x10] sm:$0xff]
        %v456 = vld [vmem:[#allocation3 + $0x18] sm:$0xff]
        %v457 = vld [vmem:[#allocation3 + $0x20] sm:$0xff]
        %v458 = vld [vmem:[#allocation3 + $0x28] sm:$0xff]
        %v459 = vld [vmem:[#allocation3 + $0x30] sm:$0xff]
        %v460 = vld [vmem:[#allocation3 + $0x38] sm:$0xff]
        %v461 = vld [vmem:[#allocation3 + $0x40] sm:$0xff]
        %v462 = vld [vmem:[#allocation3 + $0x48] sm:$0xff]
        %v463 = vld [vmem:[#allocation3 + $0x50] sm:$0xff]
        %v464 = vld [vmem:[#allocation3 + $0x58] sm:$0xff]
        %v465 = vld [vmem:[#allocation3 + $0x60] sm:$0xff]
        %v466 = vld [vmem:[#allocation3 + $0x68] sm:$0xff]
        %v467 = vld [vmem:[#allocation3 + $0x70] sm:$0xff]
        %v468 = vld [vmem:[#allocation3 + $0x78] sm:$0xff]
        %v469 = vld [vmem:[#allocation3 + $0x80] sm:$0xff]
        %v470 = vld [vmem:[#allocation3 + $0x88] sm:$0xff]
        %v471 = vld [vmem:[#allocation3 + $0x90] sm:$0xff]
        %v472 = vld [vmem:[#allocation3 + $0x98] sm:$0xff]
        %v473 = vld [vmem:[#allocation3 + $0xa0] sm:$0xff]
        %v474 = vld [vmem:[#allocation3 + $0xa8] sm:$0xff]
        %v475 = vld [vmem:[#allocation3 + $0xb0] sm:$0xff]
        %v476 = vld [vmem:[#allocation3 + $0xb8] sm:$0xff]
        %v477 = vld [vmem:[#allocation3 + $0xc0] sm:$0xff]
        %v478 = vld [vmem:[#allocation3 + $0xc8] sm:$0xff]
        %v479 = vld [vmem:[#allocation3 + $0xd0] sm:$0xff]
        %vm480 = vcmask 588800
        %v482 = vsel %vm480, %v452, 0
        %484 = vmatprep.subr.mxu0 %v454
        %485 = vmatpush1.msra.mxu0 %v453
        %486 = vmatprep.subr.mxu0 %v457
        %487 = vmatpush1.msra.mxu0 %v456
        %488 = vmatprep.subr.mxu0 %v460
        %489 = vmatpush1.msra.mxu0 %v459
        %490 = vmatprep.subr.mxu0 %v463
        %491 = vmatpush1.msra.mxu0 %v462
        %492 = vmatprep.subr.mxu0 %v466
        %493 = vmatpush1.msra.mxu0 %v465
        %494 = vmatprep.subr.mxu0 %v469
        %495 = vmatpush1.msra.mxu0 %v468
        %496 = vmatprep.subr.mxu0 %v472
        %497 = vmatpush1.msra.mxu0 %v471
        %498 = vmatprep.subr.mxu0 %v475
        %499 = vmatpush1.msra.mxu0 %v474
        %500 = vmatprep.subr.mxu0 %v478
        %501 = vmatpush1.msra.mxu0 %v477
        %502 = vmatprep.subr.mxu0 0.0
        %503 = vmatpush1.msra.mxu0 0.0
        %504 = vmatprep.subr.mxu0 0.0
        %505 = vmatpush1.msra.mxu0 0.0
        %506 = vmatprep.subr.mxu0 0.0
        %507 = vmatpush1.msra.mxu0 0.0
        %508 = vmatprep.subr.mxu0 0.0
        %509 = vmatpush1.msra.mxu0 0.0
        %510 = vmatprep.subr.mxu0 0.0
        %511 = vmatpush1.msra.mxu0 0.0
        %512 = vmatprep.subr.mxu0 0.0
        %513 = vmatpush1.msra.mxu0 0.0
        %514 = vmatprep.subr.mxu0 0.0
        %515 = vmatpush1.msra.mxu0 0.0
        %516 = vmatprep.subr.mxu0 0.0
        %517 = vmatpush1.msra.mxu0 0.0
        %518 = vmatprep.subr.mxu0 0.0
        %519 = vmatpush1.msra.mxu0 0.0
        %520 = vmatprep.subr.mxu0 0.0
        %521 = vmatpush1.msra.mxu0 0.0
        %522 = vmatprep.subr.mxu0 0.0
        %523 = vmatpush1.msra.mxu0 0.0
        %524 = vmatprep.subr.mxu0 0.0
        %525 = vmatpush1.msra.mxu0 0.0
        %526 = vmatprep.subr.mxu0 0.0
        %527 = vmatpush1.msra.mxu0 0.0
        %528 = vmatprep.subr.mxu0 0.0
        %529 = vmatpush1.msra.mxu0 0.0
        %530 = vmatprep.subr.mxu0 0.0
        %531 = vmatpush1.msra.mxu0 0.0
        %532 = vmatprep.subr.mxu0 0.0
        %533 = vmatpush1.msra.mxu0 0.0
        %534 = vmatprep.subr.mxu0 0.0
        %535 = vmatpush1.msra.mxu0 0.0
        %536 = vmatprep.subr.mxu0 0.0
        %537 = vmatpush1.msra.mxu0 0.0
        %538 = vmatprep.subr.mxu0 0.0
        %539 = vmatpush1.msra.mxu0 0.0
        %540 = vmatprep.subr.mxu0 0.0
        %541 = vmatpush1.msra.mxu0 0.0
        %542 = vmatprep.subr.mxu0 0.0
        %543 = vmatpush1.msra.mxu0 0.0
        %544 = vmatprep.subr.mxu0 0.0
        %545 = vmatpush1.msra.mxu0 0.0
        %546 = vmatprep.subr.mxu0 0.0
        %547 = vmatpush1.msra.mxu0 0.0
        %548 = vmatprep.mubr.f32.mxu0 0.0
        %549 = vmatmul.mubr.f32.gmra.mrb[0].mxu0 %v482
        %v550 = vpop.f32.mrb[0].mxu0
        %v551 = vadd.f32 0.0, %v550
        %v552 = vpop.f32.mrb[0].mxu0
        %v553 = vadd.f32 0.0, %v552
        %554 = vdwg.mxu0
        %555 = vmatprep.subr.mxu0 0.0
        %556 = vmatpush1.msra.mxu0 %v455
        %557 = vmatprep.subr.mxu0 0.0
        %558 = vmatpush1.msra.mxu0 %v458
        %559 = vmatprep.subr.mxu0 0.0
        %560 = vmatpush1.msra.mxu0 %v461
        %561 = vmatprep.subr.mxu0 0.0
        %562 = vmatpush1.msra.mxu0 %v464
        %563 = vmatprep.subr.mxu0 0.0
        %564 = vmatpush1.msra.mxu0 %v467
        %565 = vmatprep.subr.mxu0 0.0
        %566 = vmatpush1.msra.mxu0 %v470
        %567 = vmatprep.subr.mxu0 0.0
        %568 = vmatpush1.msra.mxu0 %v473
        %569 = vmatprep.subr.mxu0 0.0
        %570 = vmatpush1.msra.mxu0 %v476
        %571 = vmatprep.subr.mxu0 0.0
        %572 = vmatpush1.msra.mxu0 %v479
        %573 = vmatprep.subr.mxu0 0.0
        %574 = vmatpush1.msra.mxu0 0.0
        %575 = vmatprep.subr.mxu0 0.0
        %576 = vmatpush1.msra.mxu0 0.0
        %577 = vmatprep.subr.mxu0 0.0
        %578 = vmatpush1.msra.mxu0 0.0
        %579 = vmatprep.subr.mxu0 0.0
        %580 = vmatpush1.msra.mxu0 0.0
        %581 = vmatprep.subr.mxu0 0.0
        %582 = vmatpush1.msra.mxu0 0.0
        %583 = vmatprep.subr.mxu0 0.0
        %584 = vmatpush1.msra.mxu0 0.0
        %585 = vmatprep.subr.mxu0 0.0
        %586 = vmatpush1.msra.mxu0 0.0
        %587 = vmatprep.subr.mxu0 0.0
        %588 = vmatpush1.msra.mxu0 0.0
        %589 = vmatprep.subr.mxu0 0.0
        %590 = vmatpush1.msra.mxu0 0.0
        %591 = vmatprep.subr.mxu0 0.0
        %592 = vmatpush1.msra.mxu0 0.0
        %593 = vmatprep.subr.mxu0 0.0
        %594 = vmatpush1.msra.mxu0 0.0
        %595 = vmatprep.subr.mxu0 0.0
        %596 = vmatpush1.msra.mxu0 0.0
        %597 = vmatprep.subr.mxu0 0.0
        %598 = vmatpush1.msra.mxu0 0.0
        %599 = vmatprep.subr.mxu0 0.0
        %600 = vmatpush1.msra.mxu0 0.0
        %601 = vmatprep.subr.mxu0 0.0
        %602 = vmatpush1.msra.mxu0 0.0
        %603 = vmatprep.subr.mxu0 0.0
        %604 = vmatpush1.msra.mxu0 0.0
        %605 = vmatprep.subr.mxu0 0.0
        %606 = vmatpush1.msra.mxu0 0.0
        %607 = vmatprep.subr.mxu0 0.0
        %608 = vmatpush1.msra.mxu0 0.0
        %609 = vmatprep.subr.mxu0 0.0
        %610 = vmatpush1.msra.mxu0 0.0
        %611 = vmatprep.subr.mxu0 0.0
        %612 = vmatpush1.msra.mxu0 0.0
        %613 = vmatprep.subr.mxu0 0.0
        %614 = vmatpush1.msra.mxu0 0.0
        %615 = vmatprep.subr.mxu0 0.0
        %616 = vmatpush1.msra.mxu0 0.0
        %617 = vmatprep.subr.mxu0 0.0
        %618 = vmatpush1.msra.mxu0 0.0
        %619 = vmatprep.mubr.f32.mxu0 0.0
        %620 = vmatmul.mubr.f32.gmra.mrb[0].mxu0 %v482
        %v621 = vpop.f32.mrb[0].mxu0
        %v622 = vadd.f32 0.0, %v621
        %v623 = vpop.f32.mrb[0].mxu0
        %624 = vdwg.mxu0
        %vm625 = vcmp.lt.s32.totalorder %v237, 16
        %v626 = vsel %vm625, 1, 0
        %v627 = vlaneseq
        %v628 = vshrl.u32 %v627, 7
        %v629 = vsub.s32 0, %v628
        %v630 = vrot.slane %v626, %v629
        %v631 = vlaneseq
        %v632 = vshrl.u32 %v631, 7
        %v633 = vsub.s32 1, %v632
        %v634 = vrot.slane %v626, %v633
        %v635 = vlaneseq
        %v636 = vshrl.u32 %v635, 7
        %v637 = vsub.s32 2, %v636
        %v638 = vrot.slane %v626, %v637
        %vm639 = vcmp.eq.s32.totalorder %v630, 1
        %vm640 = vcmp.eq.s32.totalorder %v634, 1
        %vm641 = vcmp.eq.s32.totalorder %v638, 1
        %v642 = vsel %vm639, %v551, 0.0
        %v643 = vsel %vm640, %v553, 0.0
        %v644 = vsel %vm641, %v622, 0.0
        %v645 = vadd.f32 %v642, %v643
        %v646 = vadd.f32 %v645, %v644
        %647 = vadd.xlane.f32.xlu0 %v646
        %v648 = vpop.xlane.xlu0 %647
        %v649 = vmul.f32 %v648, 0.00390625
        %v650 = vmul.f32 %v642, %v551
        %v651 = vmul.f32 %v643, %v553
        %v652 = vmul.f32 %v644, %v622
        %v653 = vadd.f32 %v650, %v651
        %v654 = vadd.f32 %v653, %v652
        %655 = vadd.xlane.f32.xlu0 %v654
        %v656 = vpop.xlane.xlu0 %655
        %v657 = vmul.f32 %v656, 0.00390625
        %v658 = vmul.f32 %v649, %v649
        %v659 = vsub.f32 %v657, %v658
        %v660 = vmax.f32 %v659, 0.0
        %v661 = vsub.f32 %v551, %v649
        %v662 = vsub.f32 %v553, %v649
        %v663 = vsub.f32 %v622, %v649
        %v664 = vadd.f32 %v660, 1e-05
        %v665 = vrsqrt.pop %v664
        %v666 = vmul.f32 %v661, %v665
        %v667 = vmul.f32 %v662, %v665
        %v668 = vmul.f32 %v663, %v665
        %v669 = vmax.f32 %v666, 0.0
        %v670 = vmax.f32 %v667, 0.0
        %v671 = vmax.f32 %v668, 0.0
        %672 = vrot.lane.b32.xlu0 %v669, 1
        %v673 = vpop.permute.xlu0 %672
        %674 = vrot.lane.b32.xlu0 %v670, 1
        %v675 = vpop.permute.xlu0 %674
        %676 = vrot.lane.b32.xlu0 %v671, 1
        %v677 = vpop.permute.xlu0 %676
        %v678 = vlaneseq
        %v679 = vand.u32 %v678, 127
        %vm680 = vcmp.lt.s32.totalorder %v679, 1
        %v681 = vsel %vm680, %v675, %v677
        %v682 = vsel %vm680, %v673, %v675
        %v683 = vsel %vm680, %v677, %v673
        %684 = vrot.lane.b32.xlu0 %v669, 127
        %v685 = vpop.permute.xlu0 %684
        %686 = vrot.lane.b32.xlu0 %v670, 127
        %v687 = vpop.permute.xlu0 %686
        %688 = vrot.lane.b32.xlu0 %v671, 127
        %v689 = vpop.permute.xlu0 %688
        %vm690 = vcmp.lt.s32.totalorder %v679, 127
        %v691 = vsel %vm690, %v687, %v689
        %v692 = vsel %vm690, %v685, %v687
        %v693 = vsel %vm690, %v689, %v685
        %694 = vrot.lane.b32.xlu0 %v669, 3
        %v695 = vpop.permute.xlu0 %694
        %696 = vrot.lane.b32.xlu0 %v670, 3
        %v697 = vpop.permute.xlu0 %696
        %698 = vrot.lane.b32.xlu0 %v671, 3
        %v699 = vpop.permute.xlu0 %698
        %vm700 = vcmp.lt.s32.totalorder %v679, 3
        %v701 = vsel %vm700, %v697, %v699
        %v702 = vsel %vm700, %v695, %v697
        %v703 = vsel %vm700, %v699, %v695
        %vm704 = vcmp.eq.s32.totalorder %v237, 0
        %vm705 = vcmp.eq.s32.totalorder %v237, 17
        %v706 = vsel %vm705, 1, 0
        %v707 = vlaneseq
        %v708 = vshrl.u32 %v707, 7
        %v709 = vsub.s32 0, %v708
        %v710 = vrot.slane %v706, %v709
        %v711 = vlaneseq
        %v712 = vshrl.u32 %v711, 7
        %v713 = vsub.s32 1, %v712
        %v714 = vrot.slane %v706, %v713
        %v715 = vlaneseq
        %v716 = vshrl.u32 %v715, 7
        %v717 = vsub.s32 2, %v716
        %v718 = vrot.slane %v706, %v717
        %vm719 = vcmp.eq.s32.totalorder %v710, 1
        %vm720 = vcmp.eq.s32.totalorder %v714, 1
        %vm721 = vcmp.eq.s32.totalorder %v718, 1
        %v722 = vsel %vm719, %v703, %v683
        %v723 = vsel %vm720, %v702, %v682
        %v724 = vsel %vm721, %v701, %v681
        %v725 = vsel %vm704, 1, 0
        %v726 = vlaneseq
        %v727 = vshrl.u32 %v726, 7
        %v728 = vsub.s32 0, %v727
        %v729 = vrot.slane %v725, %v728
        %v730 = vlaneseq
        %v731 = vshrl.u32 %v730, 7
        %v732 = vsub.s32 1, %v731
        %v733 = vrot.slane %v725, %v732
        %v734 = vlaneseq
        %v735 = vshrl.u32 %v734, 7
        %v736 = vsub.s32 2, %v735
        %v737 = vrot.slane %v725, %v736
        %vm738 = vcmp.eq.s32.totalorder %v729, 1
        %vm739 = vcmp.eq.s32.totalorder %v733, 1
        %vm740 = vcmp.eq.s32.totalorder %v737, 1
        %v741 = vsel %vm738, %v692, %v722
        %v742 = vsel %vm739, %v691, %v723
        %v743 = vsel %vm740, %v693, %v724
        %747 = vrot.lane.b32.xlu0 %v741, 18
        %v748 = vpop.permute.xlu0 %747
        %749 = vrot.lane.b32.xlu0 %v742, 18
        %v750 = vpop.permute.xlu0 %749
        %751 = vrot.lane.b32.xlu0 %v743, 18
        %v752 = vpop.permute.xlu0 %751
        %vm753 = vcmask 146432
        %v754 = vsel %vm753, %v748, %v750
        %v755 = vsel %vm753, %v750, %v752
        %vm760 = vcmask 1047696
        %761 = vst.msk [vmem:[#allocation2] sm:$0xff] %vm760, %v748
        %762 = vst [vmem:[#allocation2 + $0x8] sm:$0xff] %v754
        %763 = vst [vmem:[#allocation2 + $0x10] sm:$0xff] %v755
        %764 = vst.msk [vmem:[#allocation2 + $0x18] sm:$0xff] %vm753, %v752
        %v765 = vld [vmem:[#allocation2] sm:$0xff]
        %767 = vrot.lane.b32.xlu0 %v765, 92
        %v768 = vpop.permute.xlu0 %767
        %770 = vst.msk [vmem:[#allocation2] sm:$0xff] %vm753, %v768
        %v771 = vld [vmem:[#allocation2 + $0x10] sm:$0xff]
        %773 = vrot.lane.b32.xlu0 %v771, 36
        %v774 = vpop.permute.xlu0 %773
        %vm776 = vcmask 556432
        %777 = vst.msk [vmem:[#allocation2 + $0x10] sm:$0xff] %vm776, %v774
        %v778 = vld [vmem:[#allocation2] sm:$0xff]
        %v779 = vld [vmem:[#allocation2 + $0x8] sm:$0xff]
        %v780 = vld [vmem:[#allocation2 + $0x10] sm:$0xff]
        %781 = vst [vmem:[#allocation3] sm:$0xff] %v778
        %782 = vst [vmem:[#allocation3 + $0x8] sm:$0xff] %v779
        %783 = vst [vmem:[#allocation3 + $0x10] sm:$0xff] %v780
        %v784 = vld [vmem:[#allocation2] sm:$0xff]
        %v785 = vld [vmem:[#allocation2 + $0x8] sm:$0xff]
        %v786 = vld [vmem:[#allocation2 + $0x10] sm:$0xff]
        %v787 = vld [vmem:[#allocation2 + $0x18] sm:$0xff]
        %792 = vrot.lane.b32.xlu0 %v784, 127
        %v793 = vpop.permute.xlu0 %792
        %794 = vrot.lane.b32.xlu0 %v785, 127
        %v795 = vpop.permute.xlu0 %794
        %796 = vrot.lane.b32.xlu0 %v786, 127
        %v797 = vpop.permute.xlu0 %796
        %798 = vrot.lane.b32.xlu0 %v787, 127
        %v799 = vpop.permute.xlu0 %798
        %v800 = vsel %vm260, %v793, %v795
        %v801 = vsel %vm260, %v795, %v797
        %v802 = vsel %vm260, %v797, %v799
        %806 = vst [vmem:[#allocation3 + $0x18] sm:$0xff] %v800
        %807 = vst [vmem:[#allocation3 + $0x20] sm:$0xff] %v801
        %808 = vst [vmem:[#allocation3 + $0x28] sm:$0xff] %v802
        %v809 = vld [vmem:[#allocation2] sm:$0xff]
        %v810 = vld [vmem:[#allocation2 + $0x8] sm:$0xff]
        %v811 = vld [vmem:[#allocation2 + $0x10] sm:$0xff]
        %v812 = vld [vmem:[#allocation2 + $0x18] sm:$0xff]
        %817 = vrot.lane.b32.xlu0 %v809, 126
        %v818 = vpop.permute.xlu0 %817
        %819 = vrot.lane.b32.xlu0 %v810, 126
        %v820 = vpop.permute.xlu0 %819
        %821 = vrot.lane.b32.xlu0 %v811, 126
        %v822 = vpop.permute.xlu0 %821
        %823 = vrot.lane.b32.xlu0 %v812, 126
        %v824 = vpop.permute.xlu0 %823
        %v825 = vsel %vm286, %v818, %v820
        %v826 = vsel %vm286, %v820, %v822
        %v827 = vsel %vm286, %v822, %v824
        %831 = vst [vmem:[#allocation3 + $0x30] sm:$0xff] %v825
        %832 = vst [vmem:[#allocation3 + $0x38] sm:$0xff] %v826
        %833 = vst [vmem:[#allocation3 + $0x40] sm:$0xff] %v827
        %v834 = vld [vmem:[#allocation2] sm:$0xff]
        %v835 = vld [vmem:[#allocation2 + $0x8] sm:$0xff]
        %v836 = vld [vmem:[#allocation2 + $0x10] sm:$0xff]
        %v837 = vld [vmem:[#allocation2 + $0x18] sm:$0xff]
        %842 = vrot.lane.b32.xlu0 %v834, 110
        %v843 = vpop.permute.xlu0 %842
        %844 = vrot.lane.b32.xlu0 %v835, 110
        %v845 = vpop.permute.xlu0 %844
        %846 = vrot.lane.b32.xlu0 %v836, 110
        %v847 = vpop.permute.xlu0 %846
        %848 = vrot.lane.b32.xlu0 %v837, 110
        %v849 = vpop.permute.xlu0 %848
        %v850 = vsel %vm312, %v843, %v845
        %v851 = vsel %vm312, %v845, %v847
        %v852 = vsel %vm312, %v847, %v849
        %856 = vst [vmem:[#allocation3 + $0x48] sm:$0xff] %v850
        %857 = vst [vmem:[#allocation3 + $0x50] sm:$0xff] %v851
        %858 = vst [vmem:[#allocation3 + $0x58] sm:$0xff] %v852
        %v859 = vld [vmem:[#allocation2] sm:$0xff]
        %v860 = vld [vmem:[#allocation2 + $0x8] sm:$0xff]
        %v861 = vld [vmem:[#allocation2 + $0x10] sm:$0xff]
        %v862 = vld [vmem:[#allocation2 + $0x18] sm:$0xff]
        %867 = vrot.lane.b32.xlu0 %v859, 109
        %v868 = vpop.permute.xlu0 %867
        %869 = vrot.lane.b32.xlu0 %v860, 109
        %v870 = vpop.permute.xlu0 %869
        %871 = vrot.lane.b32.xlu0 %v861, 109
        %v872 = vpop.permute.xlu0 %871
        %873 = vrot.lane.b32.xlu0 %v862, 109
        %v874 = vpop.permute.xlu0 %873
        %v875 = vsel %vm338, %v868, %v870
        %v876 = vsel %vm338, %v870, %v872
        %v877 = vsel %vm338, %v872, %v874
        %881 = vst [vmem:[#allocation3 + $0x60] sm:$0xff] %v875
        %882 = vst [vmem:[#allocation3 + $0x68] sm:$0xff] %v876
        %883 = vst [vmem:[#allocation3 + $0x70] sm:$0xff] %v877
        %v884 = vld [vmem:[#allocation2] sm:$0xff]
        %v885 = vld [vmem:[#allocation2 + $0x8] sm:$0xff]
        %v886 = vld [vmem:[#allocation2 + $0x10] sm:$0xff]
        %v887 = vld [vmem:[#allocation2 + $0x18] sm:$0xff]
        %892 = vrot.lane.b32.xlu0 %v884, 108
        %v893 = vpop.permute.xlu0 %892
        %894 = vrot.lane.b32.xlu0 %v885, 108
        %v895 = vpop.permute.xlu0 %894
        %896 = vrot.lane.b32.xlu0 %v886, 108
        %v897 = vpop.permute.xlu0 %896
        %898 = vrot.lane.b32.xlu0 %v887, 108
        %v899 = vpop.permute.xlu0 %898
        %v900 = vsel %vm364, %v893, %v895
        %v901 = vsel %vm364, %v895, %v897
        %v902 = vsel %vm364, %v897, %v899
        %906 = vst [vmem:[#allocation3 + $0x78] sm:$0xff] %v900
        %907 = vst [vmem:[#allocation3 + $0x80] sm:$0xff] %v901
        %908 = vst [vmem:[#allocation3 + $0x88] sm:$0xff] %v902
        %v909 = vld [vmem:[#allocation2] sm:$0xff]
        %v910 = vld [vmem:[#allocation2 + $0x8] sm:$0xff]
        %v911 = vld [vmem:[#allocation2 + $0x10] sm:$0xff]
        %v912 = vld [vmem:[#allocation2 + $0x18] sm:$0xff]
        %917 = vrot.lane.b32.xlu0 %v909, 92
        %v918 = vpop.permute.xlu0 %917
        %919 = vrot.lane.b32.xlu0 %v910, 92
        %v920 = vpop.permute.xlu0 %919
        %921 = vrot.lane.b32.xlu0 %v911, 92
        %v922 = vpop.permute.xlu0 %921
        %923 = vrot.lane.b32.xlu0 %v912, 92
        %v924 = vpop.permute.xlu0 %923
        %v925 = vsel %vm390, %v918, %v920
        %v926 = vsel %vm390, %v920, %v922
        %v927 = vsel %vm390, %v922, %v924
        %931 = vst [vmem:[#allocation3 + $0x90] sm:$0xff] %v925
        %932 = vst [vmem:[#allocation3 + $0x98] sm:$0xff] %v926
        %933 = vst [vmem:[#allocation3 + $0xa0] sm:$0xff] %v927
        %v934 = vld [vmem:[#allocation2] sm:$0xff]
        %v935 = vld [vmem:[#allocation2 + $0x8] sm:$0xff]
        %v936 = vld [vmem:[#allocation2 + $0x10] sm:$0xff]
        %v937 = vld [vmem:[#allocation2 + $0x18] sm:$0xff]
        %942 = vrot.lane.b32.xlu0 %v934, 91
        %v943 = vpop.permute.xlu0 %942
        %944 = vrot.lane.b32.xlu0 %v935, 91
        %v945 = vpop.permute.xlu0 %944
        %946 = vrot.lane.b32.xlu0 %v936, 91
        %v947 = vpop.permute.xlu0 %946
        %948 = vrot.lane.b32.xlu0 %v937, 91
        %v949 = vpop.permute.xlu0 %948
        %v950 = vsel %vm416, %v943, %v945
        %v951 = vsel %vm416, %v945, %v947
        %v952 = vsel %vm416, %v947, %v949
        %956 = vst [vmem:[#allocation3 + $0xa8] sm:$0xff] %v950
        %957 = vst [vmem:[#allocation3 + $0xb0] sm:$0xff] %v951
        %958 = vst [vmem:[#allocation3 + $0xb8] sm:$0xff] %v952
        %v959 = vld [vmem:[#allocation2] sm:$0xff]
        %v960 = vld [vmem:[#allocation2 + $0x8] sm:$0xff]
        %v961 = vld [vmem:[#allocation2 + $0x10] sm:$0xff]
        %v962 = vld [vmem:[#allocation2 + $0x18] sm:$0xff]
        %967 = vrot.lane.b32.xlu0 %v959, 90
        %v968 = vpop.permute.xlu0 %967
        %969 = vrot.lane.b32.xlu0 %v960, 90
        %v970 = vpop.permute.xlu0 %969
        %971 = vrot.lane.b32.xlu0 %v961, 90
        %v972 = vpop.permute.xlu0 %971
        %973 = vrot.lane.b32.xlu0 %v962, 90
        %v974 = vpop.permute.xlu0 %973
        %v975 = vsel %vm442, %v968, %v970
        %v976 = vsel %vm442, %v970, %v972
        %v977 = vsel %vm442, %v972, %v974
        %981 = vst [vmem:[#allocation3 + $0xc0] sm:$0xff] %v975
        %982 = vst [vmem:[#allocation3 + $0xc8] sm:$0xff] %v976
        %983 = vst [vmem:[#allocation3 + $0xd0] sm:$0xff] %v977
        %v984 = vld [vmem:[%s212] sm:$0xff]
        %v985 = vld [vmem:[%s212 + $0x8] sm:$0xff]
        %v986 = vld [vmem:[%s212 + $0x10] sm:$0xff]
        %v987 = vld [vmem:[%s212 + $0x18] sm:$0xff]
        %v988 = vld [vmem:[#allocation7] sm:$0xff]
        %v989 = vld [vmem:[#allocation3] sm:$0xff]
        %v990 = vld [vmem:[#allocation3 + $0x8] sm:$0xff]
        %v991 = vld [vmem:[#allocation3 + $0x10] sm:$0xff]
        %v992 = vld [vmem:[#allocation3 + $0x18] sm:$0xff]
        %v993 = vld [vmem:[#allocation3 + $0x20] sm:$0xff]
        %v994 = vld [vmem:[#allocation3 + $0x28] sm:$0xff]
        %v995 = vld [vmem:[#allocation3 + $0x30] sm:$0xff]
        %v996 = vld [vmem:[#allocation3 + $0x38] sm:$0xff]
        %v997 = vld [vmem:[#allocation3 + $0x40] sm:$0xff]
        %v998 = vld [vmem:[#allocation3 + $0x48] sm:$0xff]
        %v999 = vld [vmem:[#allocation3 + $0x50] sm:$0xff]
        %v1000 = vld [vmem:[#allocation3 + $0x58] sm:$0xff]
        %v1001 = vld [vmem:[#allocation3 + $0x60] sm:$0xff]
        %v1002 = vld [vmem:[#allocation3 + $0x68] sm:$0xff]
        %v1003 = vld [vmem:[#allocation3 + $0x70] sm:$0xff]
        %v1004 = vld [vmem:[#allocation3 + $0x78] sm:$0xff]
        %v1005 = vld [vmem:[#allocation3 + $0x80] sm:$0xff]
        %v1006 = vld [vmem:[#allocation3 + $0x88] sm:$0xff]
        %v1007 = vld [vmem:[#allocation3 + $0x90] sm:$0xff]
        %v1008 = vld [vmem:[#allocation3 + $0x98] sm:$0xff]
        %v1009 = vld [vmem:[#allocation3 + $0xa0] sm:$0xff]
        %v1010 = vld [vmem:[#allocation3 + $0xa8] sm:$0xff]
        %v1011 = vld [vmem:[#allocation3 + $0xb0] sm:$0xff]
        %v1012 = vld [vmem:[#allocation3 + $0xb8] sm:$0xff]
        %v1013 = vld [vmem:[#allocation3 + $0xc0] sm:$0xff]
        %v1014 = vld [vmem:[#allocation3 + $0xc8] sm:$0xff]
        %v1015 = vld [vmem:[#allocation3 + $0xd0] sm:$0xff]
        %v1017 = vsel %vm480, %v988, 0
        %1019 = vmatprep.subr.mxu0 %v990
        %1020 = vmatpush1.msra.mxu0 %v989
        %1021 = vmatprep.subr.mxu0 %v993
        %1022 = vmatpush1.msra.mxu0 %v992
        %1023 = vmatprep.subr.mxu0 %v996
        %1024 = vmatpush1.msra.mxu0 %v995
        %1025 = vmatprep.subr.mxu0 %v999
        %1026 = vmatpush1.msra.mxu0 %v998
        %1027 = vmatprep.subr.mxu0 %v1002
        %1028 = vmatpush1.msra.mxu0 %v1001
        %1029 = vmatprep.subr.mxu0 %v1005
        %1030 = vmatpush1.msra.mxu0 %v1004
        %1031 = vmatprep.subr.mxu0 %v1008
        %1032 = vmatpush1.msra.mxu0 %v1007
        %1033 = vmatprep.subr.mxu0 %v1011
        %1034 = vmatpush1.msra.mxu0 %v1010
        %1035 = vmatprep.subr.mxu0 %v1014
        %1036 = vmatpush1.msra.mxu0 %v1013
        %1037 = vmatprep.subr.mxu0 0.0
        %1038 = vmatpush1.msra.mxu0 0.0
        %1039 = vmatprep.subr.mxu0 0.0
        %1040 = vmatpush1.msra.mxu0 0.0
        %1041 = vmatprep.subr.mxu0 0.0
        %1042 = vmatpush1.msra.mxu0 0.0
        %1043 = vmatprep.subr.mxu0 0.0
        %1044 = vmatpush1.msra.mxu0 0.0
        %1045 = vmatprep.subr.mxu0 0.0
        %1046 = vmatpush1.msra.mxu0 0.0
        %1047 = vmatprep.subr.mxu0 0.0
        %1048 = vmatpush1.msra.mxu0 0.0
        %1049 = vmatprep.subr.mxu0 0.0
        %1050 = vmatpush1.msra.mxu0 0.0
        %1051 = vmatprep.subr.mxu0 0.0
        %1052 = vmatpush1.msra.mxu0 0.0
        %1053 = vmatprep.subr.mxu0 0.0
        %1054 = vmatpush1.msra.mxu0 0.0
        %1055 = vmatprep.subr.mxu0 0.0
        %1056 = vmatpush1.msra.mxu0 0.0
        %1057 = vmatprep.subr.mxu0 0.0
        %1058 = vmatpush1.msra.mxu0 0.0
        %1059 = vmatprep.subr.mxu0 0.0
        %1060 = vmatpush1.msra.mxu0 0.0
        %1061 = vmatprep.subr.mxu0 0.0
        %1062 = vmatpush1.msra.mxu0 0.0
        %1063 = vmatprep.subr.mxu0 0.0
        %1064 = vmatpush1.msra.mxu0 0.0
        %1065 = vmatprep.subr.mxu0 0.0
        %1066 = vmatpush1.msra.mxu0 0.0
        %1067 = vmatprep.subr.mxu0 0.0
        %1068 = vmatpush1.msra.mxu0 0.0
        %1069 = vmatprep.subr.mxu0 0.0
        %1070 = vmatpush1.msra.mxu0 0.0
        %1071 = vmatprep.subr.mxu0 0.0
        %1072 = vmatpush1.msra.mxu0 0.0
        %1073 = vmatprep.subr.mxu0 0.0
        %1074 = vmatpush1.msra.mxu0 0.0
        %1075 = vmatprep.subr.mxu0 0.0
        %1076 = vmatpush1.msra.mxu0 0.0
        %1077 = vmatprep.subr.mxu0 0.0
        %1078 = vmatpush1.msra.mxu0 0.0
        %1079 = vmatprep.subr.mxu0 0.0
        %1080 = vmatpush1.msra.mxu0 0.0
        %1081 = vmatprep.subr.mxu0 0.0
        %1082 = vmatpush1.msra.mxu0 0.0
        %1083 = vmatprep.mubr.f32.mxu0 0.0
        %1084 = vmatmul.mubr.f32.gmra.mrb[0].mxu0 %v1017
        %v1085 = vpop.f32.mrb[0].mxu0
        %v1086 = vadd.f32 0.0, %v1085
        %v1087 = vpop.f32.mrb[0].mxu0
        %v1088 = vadd.f32 0.0, %v1087
        %1089 = vdwg.mxu0
        %1090 = vmatprep.subr.mxu0 0.0
        %1091 = vmatpush1.msra.mxu0 %v991
        %1092 = vmatprep.subr.mxu0 0.0
        %1093 = vmatpush1.msra.mxu0 %v994
        %1094 = vmatprep.subr.mxu0 0.0
        %1095 = vmatpush1.msra.mxu0 %v997
        %1096 = vmatprep.subr.mxu0 0.0
        %1097 = vmatpush1.msra.mxu0 %v1000
        %1098 = vmatprep.subr.mxu0 0.0
        %1099 = vmatpush1.msra.mxu0 %v1003
        %1100 = vmatprep.subr.mxu0 0.0
        %1101 = vmatpush1.msra.mxu0 %v1006
        %1102 = vmatprep.subr.mxu0 0.0
        %1103 = vmatpush1.msra.mxu0 %v1009
        %1104 = vmatprep.subr.mxu0 0.0
        %1105 = vmatpush1.msra.mxu0 %v1012
        %1106 = vmatprep.subr.mxu0 0.0
        %1107 = vmatpush1.msra.mxu0 %v1015
        %1108 = vmatprep.subr.mxu0 0.0
        %1109 = vmatpush1.msra.mxu0 0.0
        %1110 = vmatprep.subr.mxu0 0.0
        %1111 = vmatpush1.msra.mxu0 0.0
        %1112 = vmatprep.subr.mxu0 0.0
        %1113 = vmatpush1.msra.mxu0 0.0
        %1114 = vmatprep.subr.mxu0 0.0
        %1115 = vmatpush1.msra.mxu0 0.0
        %1116 = vmatprep.subr.mxu0 0.0
        %1117 = vmatpush1.msra.mxu0 0.0
        %1118 = vmatprep.subr.mxu0 0.0
        %1119 = vmatpush1.msra.mxu0 0.0
        %1120 = vmatprep.subr.mxu0 0.0
        %1121 = vmatpush1.msra.mxu0 0.0
        %1122 = vmatprep.subr.mxu0 0.0
        %1123 = vmatpush1.msra.mxu0 0.0
        %1124 = vmatprep.subr.mxu0 0.0
        %1125 = vmatpush1.msra.mxu0 0.0
        %1126 = vmatprep.subr.mxu0 0.0
        %1127 = vmatpush1.msra.mxu0 0.0
        %1128 = vmatprep.subr.mxu0 0.0
        %1129 = vmatpush1.msra.mxu0 0.0
        %1130 = vmatprep.subr.mxu0 0.0
        %1131 = vmatpush1.msra.mxu0 0.0
        %1132 = vmatprep.subr.mxu0 0.0
        %1133 = vmatpush1.msra.mxu0 0.0
        %1134 = vmatprep.subr.mxu0 0.0
        %1135 = vmatpush1.msra.mxu0 0.0
        %1136 = vmatprep.subr.mxu0 0.0
        %1137 = vmatpush1.msra.mxu0 0.0
        %1138 = vmatprep.subr.mxu0 0.0
        %1139 = vmatpush1.msra.mxu0 0.0
        %1140 = vmatprep.subr.mxu0 0.0
        %1141 = vmatpush1.msra.mxu0 0.0
        %1142 = vmatprep.subr.mxu0 0.0
        %1143 = vmatpush1.msra.mxu0 0.0
        %1144 = vmatprep.subr.mxu0 0.0
        %1145 = vmatpush1.msra.mxu0 0.0
        %1146 = vmatprep.subr.mxu0 0.0
        %1147 = vmatpush1.msra.mxu0 0.0
        %1148 = vmatprep.subr.mxu0 0.0
        %1149 = vmatpush1.msra.mxu0 0.0
        %1150 = vmatprep.subr.mxu0 0.0
        %1151 = vmatpush1.msra.mxu0 0.0
        %1152 = vmatprep.subr.mxu0 0.0
        %1153 = vmatpush1.msra.mxu0 0.0
        %1154 = vmatprep.mubr.f32.mxu0 0.0
        %1155 = vmatmul.mubr.f32.gmra.mrb[0].mxu0 %v1017
        %v1156 = vpop.f32.mrb[0].mxu0
        %v1157 = vadd.f32 0.0, %v1156
        %v1158 = vpop.f32.mrb[0].mxu0
        %1159 = vdwg.mxu0
        %1163 = vrot.lane.b32.xlu0 %v1086, 19
        %v1164 = vpop.permute.xlu0 %1163
        %1165 = vrot.lane.b32.xlu0 %v1088, 19
        %v1166 = vpop.permute.xlu0 %1165
        %1167 = vrot.lane.b32.xlu0 %v1157, 19
        %v1168 = vpop.permute.xlu0 %1167
        %vm1169 = vcmask 154624
        %v1170 = vsel %vm1169, %v1164, %v1166
        %v1171 = vsel %vm1169, %v1166, %v1168
        %v1176 = vadd.f32 %v984, %v1164
        %v1177 = vadd.f32 %v985, %v1170
        %v1178 = vadd.f32 %v986, %v1171
        %v1179 = vadd.f32 %v987, %v1168
        %1184 = vrot.lane.b32.xlu0 %v1176, 109
        %v1185 = vpop.permute.xlu0 %1184
        %1186 = vrot.lane.b32.xlu0 %v1177, 109
        %v1187 = vpop.permute.xlu0 %1186
        %1188 = vrot.lane.b32.xlu0 %v1178, 109
        %v1189 = vpop.permute.xlu0 %1188
        %1190 = vrot.lane.b32.xlu0 %v1179, 109
        %v1191 = vpop.permute.xlu0 %1190
        %v1192 = vsel %vm338, %v1185, %v1187
        %v1193 = vsel %vm338, %v1187, %v1189
        %v1194 = vsel %vm338, %v1189, %v1191
        %1198 = vst [vmem:[%s236] sm:$0xff] %v1192
        %1199 = vst [vmem:[%s236 + $0x8] sm:$0xff] %v1193
        %1200 = vst [vmem:[%s236 + $0x10] sm:$0xff] %v1194
        %s1201 = sand.u32 %s117, 1
        %s1202 = scalar_lea.sflag [#allocation6], %s1201
        %s1203 = sand.u32 %s117, 1
        %s1204 = smul.addr %s1203, 24
        %s1205 = scalar_lea.vmem [#allocation10], %s1204
        // Predicated region
        $region49: #{tpu_custom_call.1} parent=35 // pred_check
          %p1206 = pneg %p127
        $region50: #{tpu_custom_call.1} parent=35 // pred_check_branch
          %1208 = sbr.rel (%p1206) target = $region52
        $region51: #{tpu_custom_call.1} parent=35 // pred_region
          %s1210 = ssub.s32 384, 384
          %1211 = vsyncadd %s1202, %s1210
          %s1212 = smul.addr %s20, 3
          %s1213 = smul.addr %s1212, 128
          %s1214 = scalar_lea.hbm %s4, %s1213
          %s1216 = sshll.u32 %s1205, 4
          %s1217 = int_to_ptr.vmem [resolvable:$true] %s1216
          %1219 = dma.vmem_to_hbm [thread:$0]  %s1217, 384, %s1214, %s1202
        $region52: #{tpu_custom_call.1} parent=35 // pred_fallthru
          _
      $region36: #{tpu_custom_call.1} parent=5 // pred_fallthru
        _
      %p1220 = scmp.le.s32.totalorder 2, %s15
      // Predicated region
      $region53: #{tpu_custom_call.1} parent=5 // pred_check
        %p1221 = pneg %p1220
      $region54: #{tpu_custom_call.1} parent=5 // pred_check_branch
        %1223 = sbr.rel (%p1221) target = $region56
      $region55: #{tpu_custom_call.1} parent=5 // pred_region
        %s1224 = ssub.s32 %s15, 2
        // Predicated region
        $region57: #{tpu_custom_call.1} parent=55 // pred_check
          %p1225 = pneg %p133
        $region58: #{tpu_custom_call.1} parent=55 // pred_check_branch
          %1227 = sbr.rel (%p1225) target = $region60
        $region59: #{tpu_custom_call.1} parent=55 // pred_region
          %s1228 = sand.u32 %s118, 1
          %s1229 = scalar_lea.sflag [#allocation6], %s1228
          %s1230 = sand.u32 %s118, 1
          %s1231 = smul.addr %s1230, 24
          %s1232 = scalar_lea.vmem [#allocation10], %s1231
          %1233 = dma.done %s1229, 384
        $region60: #{tpu_custom_call.1} parent=55 // pred_fallthru
          _
      $region56: #{tpu_custom_call.1} parent=5 // pred_fallthru
        _
    $region6: #{tpu_custom_call.1} parent=1 // loop_footer
      %s19 = sadd.s32 1, %s15
    $region7: #{tpu_custom_call.1} parent=1 // loop_footer_branch
      %14 = sbr.rel target = $region3
    $region8: #{tpu_custom_call.1} parent=1 // loop_exit
      _
    %1234 = vsyncpa [#allocation5], 1
    %s1235 = scalar_lea.sflag [#allocation5], 1
    %1236 = vsyncpa %s1235, 1
    %1237 = vsyncpa [#allocation8], 1
    %1238 = vsyncpa [#allocation6], 1
    %s1239 = scalar_lea.sflag [#allocation6], 1
    %1240 = vsyncpa %s1239, 1

</llo_original>
